<compile_context>
chip_gen: v6e
topology: v6e:2x2x1
jax: 0.10.0
libtpu: 0.0.40
codegen_flags: <defaults>
</compile_context>

<pallas_src>
import functools

import jax
import jax.numpy as jnp
from jax import lax
from jax.experimental import pallas as pl
from jax.experimental.pallas import tpu as pltpu


def _supcon3_kernel(f1_ref, f2n_ref, lab1_ref, lab2_ref, out_ref, *,
                    inv_t, tile_rows):
    eps2 = jnp.float32(1e-24)            # (1e-12)^2 -> matches F.normalize eps clamp
    inv_t = jnp.float32(inv_t)
    nkeys = f2n_ref.shape[0]
    compute_dtype = f2n_ref.dtype        # bf16 if the wrapper pre-cast the keys

    i0 = pl.multiple_of(pl.program_id(0) * tile_rows, tile_rows)

    # ---- anchors: L2-normalize the (TM,D) tile, fold 1/T into the MXU LHS ----
    f1 = f1_ref[...].astype(jnp.float32)
    inv_n1 = lax.rsqrt(jnp.maximum(jnp.sum(f1 * f1, axis=1, keepdims=True), eps2))
    lhs1 = (f1 * (inv_n1 * inv_t)).astype(compute_dtype)              # (TM, D)

    # ---- keys: pre-normalized in the wrapper, resident across all grid steps ----
    f2n = f2n_ref[...]                                                # (B, D)
    f2nt = f2n_ref[pl.ds(i0, tile_rows), :]                           # (TM, D) slice
    f2nt_f32 = f2nt.astype(jnp.float32)
    lhs2 = (f2nt_f32 * inv_t).astype(compute_dtype)                   # (TM, D)

    dnums = (((1,), (1,)), ((), ()))                                  # dim1 x dim1
    adc1 = lax.dot_general(lhs1, f2n, dnums,
                           preferred_element_type=jnp.float32)        # (TM, B), /T
    adc2 = lax.dot_general(lhs2, f2n, dnums,
                           preferred_element_type=jnp.float32)        # (TM, B), /T

    max1 = jnp.max(adc1, axis=1, keepdims=True)                       # (TM, 1)
    max2 = jnp.max(adc2, axis=1, keepdims=True)                       # (TM, 1)

    # denominator = rowsum(exp(adc2 - max2)) minus the self term.  adc2's diagonal
    # is inv_t * ||f2n[r]||^2 (== 1/T, or 0 for exactly-zero feature rows thanks to
    # the normalize eps clamp), recovered from the (TM,D) tile — no (B,B) eye.
    exp2 = jnp.exp(adc2 - max2)                                       # (TM, B)
    self_sim = inv_t * jnp.sum(f2nt_f32 * f2nt_f32, axis=1, keepdims=True)
    denom = jnp.sum(exp2, axis=1, keepdims=True) - jnp.exp(self_sim - max2)
    t_col = max1 + jnp.log(denom)                                     # (TM, 1)

    # positives straight from the label vectors (no O(B^2) mask DMA).  Per-row sums
    # are done on the MXU against a ones row so the results come out lane-dense.
    eq = lab1_ref[...] == lab2_ref[...]                               # (TM, B) bool
    logprob_pos = jnp.where(eq, adc1 - t_col, 0.0)                    # log_probs * pos
    posf = eq.astype(jnp.float32)
    ones_b = jnp.ones((1, nkeys), jnp.float32)
    lp_row = lax.dot_general(ones_b, logprob_pos, dnums,
                             preferred_element_type=jnp.float32)      # (1, TM)
    npos_row = lax.dot_general(ones_b, posf, dnums,
                               preferred_element_type=jnp.float32)    # (1, TM)

    # lane-dense packed output: row 0 = sum(log_probs * positives), row 1 = n_pos
    out_ref[...] = jnp.concatenate([lp_row, npos_row], axis=0)        # (2, TM)


def _vmem_limit_bytes():
    """Generation-aware scoped-VMEM limit (~48 MiB on v7x, ~96 MiB on v5e/v6e)."""
    try:
        cap = int(pltpu.get_tpu_info().vmem_capacity_bytes)
    except Exception:
        cap = 64 << 20                    # conservative fallback: v7x per-TC VMEM
    return min((cap * 3) // 4, 100 << 20)


def _pick_tile_rows(batch, feat_dim, vmem_budget, resident_copies=2, cap=1024):
    """VMEM- and MXU-aware anchor-tile height.

    Budget model: ~5 live f32 (TM,B) slabs (adc1/adc2/exp2/logprob_pos/posf) plus
    the double-buffered (TM,D) anchor tile, on top of the resident key matrix.
    """
    if batch <= 128 or batch % 128 != 0:
        # Lane-dense (2, TM) output blocks need TM % 128 == 0 or TM == batch.
        return batch
    per_row = 5 * batch * 4 + 2 * feat_dim * 4
    avail = vmem_budget - resident_copies * batch * feat_dim * 4
    cap = min(cap, max(avail // per_row, 128))
    best = 128
    t = 128
    while t <= min(batch, cap):
        # largest divisor of batch under the cap, preferring 256-aligned (MXU height)
        if batch % t == 0 and ((t % 256 == 0) or (best % 256 != 0)):
            best = t
        t += 128
    return best
    # TODO(synk): key-column (online-softmax) chunking when even TM=128 exceeds budget.


def supcon3_pallas(tmask, worstk, features1, features2, labels1, labels2,
                   temperature=0.5, distance=0.5, tile_rows=None, mxu_bf16=False):
    """Forward of SupConLoss3 (returns `loss` only, like the PyTorch module).
    `tmask` and `distance` do not affect the returned value (interface parity)."""
    del tmask, distance

    B, D = features1.shape
    assert features2.shape == (B, D)

    # ---- O(B) / one-shot O(B*D) glue in plain JAX (not repeated per grid step) ----
    lab1 = jnp.argmax(labels1, axis=1).astype(jnp.int32)                 # (B,)
    lab2 = labels2.reshape(-1).astype(jnp.int32)                         # (B,)
    mask3 = jnp.any(lab2[:, None] == jnp.asarray(worstk).reshape(1, -1), axis=1)

    f1 = features1.astype(jnp.float32)
    f2 = features2.astype(jnp.float32)
    n2 = jnp.sqrt(jnp.sum(f2 * f2, axis=1, keepdims=True))
    f2n = f2 / jnp.maximum(n2, 1e-12)           # hoisted: normalized once, not per step
    if mxu_bf16:
        # TODO(synk): bf16 MXU feed (~3-6x faster on v6e/v7x); re-validate tolerance.
        f2n = f2n.astype(jnp.bfloat16)

    vmem_limit = _vmem_limit_bytes()
    f2_bytes = B * D * f2n.dtype.itemsize
    use_single_buffer = f2_bytes >= (4 << 20) and hasattr(pl, "Buffered")
    resident_copies = 1 if use_single_buffer else 2

    if tile_rows is None:
        tile_rows = _pick_tile_rows(B, D, int(vmem_limit * 0.8),
                                    resident_copies=resident_copies)
    assert B % tile_rows == 0
    assert tile_rows == B or tile_rows % 128 == 0, "lane-dense output tiling"

    def resident_spec(block_shape):
        # Grid-invariant block: single-buffer it when big (saves a full extra copy).
        if use_single_buffer:
            try:
                return pl.BlockSpec(block_shape, lambda i: (0, 0),
                                    pipeline_mode=pl.Buffered(1))
            except TypeError:
                pass
        return pl.BlockSpec(block_shape, lambda i: (0, 0))

    kernel = functools.partial(_supcon3_kernel,
                               inv_t=1.0 / float(temperature),
                               tile_rows=tile_rows)

    out = pl.pallas_call(
        kernel,
        out_shape=jax.ShapeDtypeStruct((2, B), jnp.float32),
        grid=(B // tile_rows,),
        in_specs=[
            pl.BlockSpec((tile_rows, D), lambda i: (i, 0)),    # anchor features tile
            resident_spec((B, D)),                             # normalized keys
            pl.BlockSpec((tile_rows, 1), lambda i: (i, 0)),    # anchor labels tile
            resident_spec((1, B)),                             # key labels
        ],
        out_specs=pl.BlockSpec((2, tile_rows), lambda i: (0, i)),
        compiler_params=pltpu.CompilerParams(
            dimension_semantics=("parallel",),
            vmem_limit_bytes=int(vmem_limit)),
    )(f1, f2n, lab1.reshape(B, 1), lab2.reshape(1, B))

    lp, npos = out[0], out[1]

    # ---- selection + mean (mirrors the module's boolean indexing) ----
    nps_sel = jnp.where(mask3, npos, 0.0)
    sel = nps_sel > 0
    vals = jnp.where(sel, lp / jnp.where(sel, nps_sel, 1.0), 0.0)
    # NaN when no row is selected, matching torch's mean over an empty tensor.
    loss = -(jnp.sum(vals) / jnp.sum(sel.astype(jnp.float32)))
    return loss


def _supcon3_reference(tmask, worstk, features1, features2, labels1, labels2,
                       temperature=0.5, distance=0.5):
    """Pure-JAX mirror of the PyTorch forward (returns `loss` only)."""
    del tmask, distance
    eps = 1e-12
    f1 = features1 / jnp.maximum(jnp.linalg.norm(features1, axis=1, keepdims=True), eps)
    f2 = features2 / jnp.maximum(jnp.linalg.norm(features2, axis=1, keepdims=True), eps)
    B = f1.shape[0]
    lab1 = jnp.argmax(labels1, axis=1)
    lab2 = labels2.reshape(-1)
    mask = (lab1[:, None] == lab2[None, :]).astype(jnp.float32)
    mask2 = (lab2[:, None] == lab2[None, :]).astype(jnp.float32)
    mask3 = jnp.any(lab2[:, None] == jnp.asarray(worstk).reshape(1, -1), axis=1).astype(jnp.float32)
    adc1 = f1 @ f2.T / temperature
    adc2 = f2 @ f2.T / temperature
    logits1 = adc1 - adc1.max(1, keepdims=True)
    logits2 = adc2 - adc2.max(1, keepdims=True)
    exp2 = jnp.exp(logits2)
    eye = jnp.eye(B, dtype=jnp.float32)
    neg2 = 1.0 - mask2
    pos2 = mask2 * (1.0 - eye)
    denom = (exp2 * neg2).sum(1, keepdims=True) + (exp2 * pos2).sum(1, keepdims=True)
    log_probs = logits1 - jnp.log(denom)
    lp = (log_probs * mask).sum(1)
    npos = mask.sum(1)
    nps_sel = mask3 * npos
    sel = nps_sel > 0
    vals = jnp.where(sel, lp / jnp.where(sel, nps_sel, 1.0), 0.0)
    return -(jnp.sum(vals) / jnp.sum(sel.astype(jnp.float32)))


if __name__ == "__main__":
    key = jax.random.PRNGKey(0)
    B, D, C = 256, 128, 4
    k1, k2 = jax.random.split(key)
    features1 = jax.random.normal(k1, (B, D), dtype=jnp.float32)
    features2 = jax.random.normal(k2, (B, D), dtype=jnp.float32)

    # deterministic labels so the selected set is non-empty (avoids the NaN branch)
    classes = jnp.arange(B, dtype=jnp.int32) % C
    labels1 = jax.nn.one_hot(classes, C, dtype=jnp.float32)   # argmax == classes
    labels2 = classes                                         # (B,) int32
    tmask = jnp.ones((B,), dtype=jnp.float32)                 # unused by the forward
    worstk = jnp.array([0, 1], dtype=jnp.int32)

    ref = jax.block_until_ready(
        _supcon3_reference(tmask, worstk, features1, features2, labels1, labels2,
                           temperature=0.5, distance=0.5))

    # explicit MXU-aligned tiling -> grid=(2,)
    out = jax.block_until_ready(
        supcon3_pallas(tmask, worstk, features1, features2, labels1, labels2,
                       temperature=0.5, distance=0.5, tile_rows=128))
    assert jnp.allclose(out, ref, atol=2e-4, rtol=2e-4), (out, ref)

    # VMEM-aware auto tiling path
    out_auto = jax.block_until_ready(
        supcon3_pallas(tmask, worstk, features1, features2, labels1, labels2,
                       temperature=0.5, distance=0.5))
    assert jnp.allclose(out_auto, ref, atol=2e-4, rtol=2e-4), (out_auto, ref)

    print("KERNEL_OK")
</pallas_src>

<mosaic_0001>
module attributes {stable_mosaic.version = 11 : i64} {
  func.func @_supcon3_kernel(%arg0: i32, %arg1: memref<128x128xf32, #tpu.memory_space<vmem>>, %arg2: memref<256x128xf32, #tpu.memory_space<vmem>>, %arg3: memref<128x1xi32, #tpu.memory_space<vmem>>, %arg4: memref<1x256xi32, #tpu.memory_space<vmem>>, %arg5: memref<2x128xf32, #tpu.memory_space<vmem>>) attributes {dimension_semantics = [#tpu.dimension_semantics<parallel>], iteration_bounds = array<i64: 2>, scalar_prefetch = 0 : i64, scratch_operands = 0 : i64, tpu.core_type = #tpu.core_type<tc>, window_params = [{transform_indices = @transform_0, window_bounds = array<i64: 128, 128>}, {pipeline_mode = #tpu.pipeline_mode<synchronous>, transform_indices = @transform_1, window_bounds = array<i64: 256, 128>}, {transform_indices = @transform_2, window_bounds = array<i64: 128, 1>}, {pipeline_mode = #tpu.pipeline_mode<synchronous>, transform_indices = @transform_3, window_bounds = array<i64: 1, 256>}, {transform_indices = @transform_4, window_bounds = array<i64: 2, 128>}]} {
    %c128_i32 = arith.constant 128 : i32
    %0 = arith.muli %arg0, %c128_i32 : i32
    %1 = tpu.assume_multiple %0, 128 : i32
    %c0 = arith.constant 0 : index
    %c0_0 = arith.constant 0 : index
    %2 = vector.load %arg1[%c0, %c0_0] : memref<128x128xf32, #tpu.memory_space<vmem>>, vector<128x128xf32>
    %3 = arith.mulf %2, %2 : vector<128x128xf32>
    %cst = arith.constant dense<0.000000e+00> : vector<128xf32>
    %4 = vector.multi_reduction <add>, %3, %cst [1] : vector<128x128xf32> to vector<128xf32>
    %5 = vector.shape_cast %4 : vector<128xf32> to vector<128x1xf32>
    %cst_1 = arith.constant 1.000000e-24 : f32
    %6 = vector.broadcast %cst_1 : f32 to vector<128x1xf32>
    %7 = arith.maximumf %5, %6 : vector<128x1xf32>
    %8 = math.rsqrt %7 : vector<128x1xf32>
    %cst_2 = arith.constant 2.000000e+00 : f32
    %9 = vector.broadcast %cst_2 : f32 to vector<128x1xf32>
    %10 = arith.mulf %8, %9 : vector<128x1xf32>
    %11 = vector.broadcast %10 : vector<128x1xf32> to vector<128x128xf32>
    %12 = arith.mulf %2, %11 : vector<128x128xf32>
    %c0_3 = arith.constant 0 : index
    %c0_4 = arith.constant 0 : index
    %13 = vector.load %arg2[%c0_3, %c0_4] : memref<256x128xf32, #tpu.memory_space<vmem>>, vector<256x128xf32>
    %14 = arith.index_cast %1 : i32 to index
    %c0_5 = arith.constant 0 : index
    %15 = vector.load %arg2[%14, %c0_5] : memref<256x128xf32, #tpu.memory_space<vmem>>, vector<128x128xf32>
    %cst_6 = arith.constant 2.000000e+00 : f32
    %16 = vector.broadcast %cst_6 : f32 to vector<128x128xf32>
    %17 = arith.mulf %15, %16 : vector<128x128xf32>
    %cst_7 = arith.constant dense<0.000000e+00> : vector<128x256xf32>
    %18 = tpu.matmul %12, %13, %cst_7 {dimension_numbers = #tpu.dot_dimension_numbers<[1], [1], [0], [0], [0, 0, 1, 0], [], []>} : vector<128x128xf32>, vector<256x128xf32>, vector<128x256xf32> -> vector<128x256xf32>
    %cst_8 = arith.constant dense<0.000000e+00> : vector<128x256xf32>
    %19 = tpu.matmul %17, %13, %cst_8 {dimension_numbers = #tpu.dot_dimension_numbers<[1], [1], [0], [0], [0, 0, 1, 0], [], []>} : vector<128x128xf32>, vector<256x128xf32>, vector<128x256xf32> -> vector<128x256xf32>
    %cst_9 = arith.constant dense<0xFF800000> : vector<128xf32>
    %20 = vector.multi_reduction <maximumf>, %18, %cst_9 [1] : vector<128x256xf32> to vector<128xf32>
    %21 = vector.shape_cast %20 : vector<128xf32> to vector<128x1xf32>
    %cst_10 = arith.constant dense<0xFF800000> : vector<128xf32>
    %22 = vector.multi_reduction <maximumf>, %19, %cst_10 [1] : vector<128x256xf32> to vector<128xf32>
    %23 = vector.shape_cast %22 : vector<128xf32> to vector<128x1xf32>
    %24 = vector.broadcast %23 : vector<128x1xf32> to vector<128x256xf32>
    %25 = arith.subf %19, %24 : vector<128x256xf32>
    %26 = math.exp %25 : vector<128x256xf32>
    %27 = arith.mulf %15, %15 : vector<128x128xf32>
    %cst_11 = arith.constant dense<0.000000e+00> : vector<128xf32>
    %28 = vector.multi_reduction <add>, %27, %cst_11 [1] : vector<128x128xf32> to vector<128xf32>
    %29 = vector.shape_cast %28 : vector<128xf32> to vector<128x1xf32>
    %cst_12 = arith.constant 2.000000e+00 : f32
    %30 = vector.broadcast %cst_12 : f32 to vector<128x1xf32>
    %31 = arith.mulf %30, %29 : vector<128x1xf32>
    %cst_13 = arith.constant dense<0.000000e+00> : vector<128xf32>
    %32 = vector.multi_reduction <add>, %26, %cst_13 [1] : vector<128x256xf32> to vector<128xf32>
    %33 = vector.shape_cast %32 : vector<128xf32> to vector<128x1xf32>
    %34 = arith.subf %31, %23 : vector<128x1xf32>
    %35 = math.exp %34 : vector<128x1xf32>
    %36 = arith.subf %33, %35 : vector<128x1xf32>
    %37 = math.log %36 : vector<128x1xf32>
    %38 = arith.addf %21, %37 : vector<128x1xf32>
    %c0_14 = arith.constant 0 : index
    %c0_15 = arith.constant 0 : index
    %39 = vector.load %arg3[%c0_14, %c0_15] : memref<128x1xi32, #tpu.memory_space<vmem>>, vector<128x1xi32>
    %c0_16 = arith.constant 0 : index
    %c0_17 = arith.constant 0 : index
    %40 = vector.load %arg4[%c0_16, %c0_17] : memref<1x256xi32, #tpu.memory_space<vmem>>, vector<1x256xi32>
    %41 = vector.broadcast %39 : vector<128x1xi32> to vector<128x256xi32>
    %42 = vector.broadcast %40 : vector<1x256xi32> to vector<128x256xi32>
    %43 = arith.cmpi eq, %41, %42 : vector<128x256xi32>
    %44 = vector.broadcast %38 : vector<128x1xf32> to vector<128x256xf32>
    %45 = arith.subf %18, %44 : vector<128x256xf32>
    %cst_18 = arith.constant 0.000000e+00 : f32
    %46 = vector.broadcast %cst_18 : f32 to vector<128x256xf32>
    %47 = arith.select %43, %45, %46 : vector<128x256xi1>, vector<128x256xf32>
    %48 = arith.extui %43 : vector<128x256xi1> to vector<128x256xi32>
    %49 = arith.sitofp %48 : vector<128x256xi32> to vector<128x256xf32>
    %cst_19 = arith.constant 1.000000e+00 : f32
    %50 = vector.broadcast %cst_19 : f32 to vector<1x256xf32>
    %cst_20 = arith.constant dense<0.000000e+00> : vector<1x128xf32>
    %51 = tpu.matmul %50, %47, %cst_20 {dimension_numbers = #tpu.dot_dimension_numbers<[1], [1], [0], [0], [0, 0, 1, 0], [], []>} : vector<1x256xf32>, vector<128x256xf32>, vector<1x128xf32> -> vector<1x128xf32>
    %cst_21 = arith.constant dense<0.000000e+00> : vector<1x128xf32>
    %52 = tpu.matmul %50, %49, %cst_21 {dimension_numbers = #tpu.dot_dimension_numbers<[1], [1], [0], [0], [0, 0, 1, 0], [], []>} : vector<1x256xf32>, vector<128x256xf32>, vector<1x128xf32> -> vector<1x128xf32>
    %53 = tpu.concatenate %51, %52 in 0 : vector<1x128xf32>, vector<1x128xf32> -> vector<2x128xf32>
    %c0_22 = arith.constant 0 : index
    %c0_23 = arith.constant 0 : index
    %54 = vector.load %arg5[%c0_22, %c0_23] : memref<2x128xf32, #tpu.memory_space<vmem>>, vector<2x128xf32>
    tpu.vector_store %arg5[%c0_22, %c0_23], %53 {strides = array<i32>} : memref<2x128xf32, #tpu.memory_space<vmem>>, vector<2x128xf32>,
    return
  }
  func.func @transform_0(%arg0: i32) -> (i32, i32) {
    %c0_i32 = arith.constant 0 : i32
    %c0_i32_0 = arith.constant 0 : i32
    return %arg0, %c0_i32 : i32, i32
  }
  func.func @transform_1(%arg0: i32) -> (i32, i32) {
    %c0_i32 = arith.constant 0 : i32
    %c0_i32_0 = arith.constant 0 : i32
    %c0_i32_1 = arith.constant 0 : i32
    return %c0_i32, %c0_i32_0 : i32, i32
  }
  func.func @transform_2(%arg0: i32) -> (i32, i32) {
    %c0_i32 = arith.constant 0 : i32
    %c0_i32_0 = arith.constant 0 : i32
    return %arg0, %c0_i32 : i32, i32
  }
  func.func @transform_3(%arg0: i32) -> (i32, i32) {
    %c0_i32 = arith.constant 0 : i32
    %c0_i32_0 = arith.constant 0 : i32
    %c0_i32_1 = arith.constant 0 : i32
    return %c0_i32, %c0_i32_0 : i32, i32
  }
  func.func @transform_4(%arg0: i32) -> (i32, i32) {
    %c0_i32 = arith.constant 0 : i32
    %c0_i32_0 = arith.constant 0 : i32
    return %c0_i32, %arg0 : i32, i32
  }
}

</mosaic_0001>

<llo_original>
// kernel: tpu_custom_call.1
$region0: #{tpu_custom_call.1}
  #allocation0 [shape = 'u32[]', space=smem, size = 0x4, offset = 0x4, fixed_abs, tag = 'smem constant byte address 0x4 - core index']
  #allocation1 [shape = 'u32[144,128]{1,0:T(1,128)}', space=vmem, size = 0x12000, scoped, tag = 'internal scratch']
  %s0 = inlined_call_operand.vmem [shape: f32[256,128], index: 0, kind: input, shape index: {}]
  %s1 = inlined_call_operand.hbm [shape: f32[256,128], index: 1, kind: input, shape index: {}]
  %s2 = inlined_call_operand.vmem [shape: s32[256,1], index: 2, kind: input, shape index: {}]
  %s3 = inlined_call_operand.vmem [shape: s32[1,256], index: 3, kind: input, shape index: {}]
  %s4 = inlined_call_operand.hbm [shape: f32[2,256], index: 4, kind: output, shape index: {}]
  %s5 = sld [smem:[#allocation0]]
  $region53: #{tpu_custom_call.1} parent=0
    _
  %s7 = ssub.s32 1, %s5
  %s8 = scalar_select 0, %s7, %s5
  $region1: #{tpu_custom_call.1} parent=0
    #allocation2 [shape = 'u8[131072]{0}', space=vmem, size = 0x20000, scoped, tag = 'input window, operand 1, single buffered']
    #allocation3 [shape = 's32[2]{0}', space=sflag, size = 0x8, scoped, tag = 'scoped memory for tpu_custom_call.1']
    #allocation4 [shape = 's32[2]{0}', space=sflag, size = 0x8, scoped, tag = 'scoped memory for tpu_custom_call.1']
    #allocation5 [shape = 'u8[2048]{0}', space=vmem, size = 0x800, scoped, tag = 'output window, operand 0']
    %9 = vsyncpa [#allocation3], 0
    %10 = vsyncpa [#allocation4], 0
    %s11 = scalar_lea.sflag [#allocation4], 1
    %12 = vsyncpa %s11, 0
    loop: start=0, step=1, limit=4
    $region2: #{tpu_custom_call.1} parent=1 // loop_pre_header
      _
    $region3: #{tpu_custom_call.1} parent=1 // loop_header
      %s14 = sphi 0, %s18
      %p15 = scmp.ge.s32.totalorder %s14, 4
      %s24 = sphi 0, %s26
      %s27 = sphi 0, %s24
      %s28 = sphi 0, %s27
      %s44 = sphi 0, %s28
      %s48 = sphi 0, %s48
      %s50 = sphi 0, %s48
      %s51 = sphi 0, %s50
      %s65 = sphi 0, %s51
      %s71 = sphi 0, %s73
      %s74 = sphi 0, %s71
      %s75 = sphi 0, %s74
      %s91 = sphi 0, %s75
      %s95 = sphi 0, %s95
      %s97 = sphi 0, %s95
      %s98 = sphi 0, %s97
      %s112 = sphi 0, %s98
      %s118 = sphi 0, %s120
      %s121 = sphi 0, %s118
      %s122 = sphi 0, %s121
      %s138 = sphi 0, %s122
    $region4: #{tpu_custom_call.1} parent=1 // loop_header_branch
      %17 = sbr.rel (%p15) target = $region8
    $region5: #{tpu_custom_call.1} parent=1 // loop_body
      %s19 = ssub.s32 %s14, 1
      %s20 = ssub.s32 %s14, 2
      %s21 = sadd.s32 %s14, 1
      %s22 = ssub.s32 %s14, %s21
      %p23 = scmp.eq.s32.totalorder %s22, 0
      %s25 = sadd.s32 %s24, 1
      %s26 = scalar_select %p23, %s24, %s25
      %p29 = pneg %p23
      %p30 = scmp.eq.s32.totalorder %s14, 1
      %p31 = por %p29, %p30
      %p32 = scmp.ne.s32.totalorder %s24, %s27
      %p33 = scmp.eq.s32.totalorder %s14, 0
      %p34 = por %p32, %p33
      %p35 = scmp.ne.s32.totalorder %s24, %s27
      %p36 = scmp.eq.s32.totalorder %s19, 1
      %p37 = por %p35, %p36
      %p38 = scmp.ne.s32.totalorder %s27, %s28
      %p39 = scmp.eq.s32.totalorder %s19, 0
      %p40 = por %p38, %p39
      %p41 = scmp.ne.s32.totalorder %s27, %s28
      %p42 = scmp.eq.s32.totalorder %s20, 1
      %p43 = por %p41, %p42
      %p45 = scmp.ne.s32.totalorder %s28, %s44
      %p46 = scmp.eq.s32.totalorder %s20, 0
      %p47 = por %p45, %p46
      %s49 = sadd.s32 %s48, 1
      %p52 = scmp.eq.s32.totalorder %s14, 1
      %p53 = scmp.ne.s32.totalorder %s48, %s50
      %p54 = scmp.eq.s32.totalorder %s14, 0
      %p55 = por %p53, %p54
      %p56 = scmp.ne.s32.totalorder %s48, %s50
      %p57 = scmp.eq.s32.totalorder %s19, 1
      %p58 = por %p56, %p57
      %p59 = scmp.ne.s32.totalorder %s50, %s51
      %p60 = scmp.eq.s32.totalorder %s19, 0
      %p61 = por %p59, %p60
      %p62 = scmp.ne.s32.totalorder %s50, %s51
      %p63 = scmp.eq.s32.totalorder %s20, 1
      %p64 = por %p62, %p63
      %p66 = scmp.ne.s32.totalorder %s51, %s65
      %p67 = scmp.eq.s32.totalorder %s20, 0
      %p68 = por %p66, %p67
      %s69 = ssub.s32 %s14, %s21
      %p70 = scmp.eq.s32.totalorder %s69, 0
      %s72 = sadd.s32 %s71, 1
      %s73 = scalar_select %p70, %s71, %s72
      %p76 = pneg %p70
      %p77 = scmp.eq.s32.totalorder %s14, 1
      %p78 = por %p76, %p77
      %p79 = scmp.ne.s32.totalorder %s71, %s74
      %p80 = scmp.eq.s32.totalorder %s14, 0
      %p81 = por %p79, %p80
      %p82 = scmp.ne.s32.totalorder %s71, %s74
      %p83 = scmp.eq.s32.totalorder %s19, 1
      %p84 = por %p82, %p83
      %p85 = scmp.ne.s32.totalorder %s74, %s75
      %p86 = scmp.eq.s32.totalorder %s19, 0
      %p87 = por %p85, %p86
      %p88 = scmp.ne.s32.totalorder %s74, %s75
      %p89 = scmp.eq.s32.totalorder %s20, 1
      %p90 = por %p88, %p89
      %p92 = scmp.ne.s32.totalorder %s75, %s91
      %p93 = scmp.eq.s32.totalorder %s20, 0
      %p94 = por %p92, %p93
      %s96 = sadd.s32 %s95, 1
      %p99 = scmp.eq.s32.totalorder %s14, 1
      %p100 = scmp.ne.s32.totalorder %s95, %s97
      %p101 = scmp.eq.s32.totalorder %s14, 0
      %p102 = por %p100, %p101
      %p103 = scmp.ne.s32.totalorder %s95, %s97
      %p104 = scmp.eq.s32.totalorder %s19, 1
      %p105 = por %p103, %p104
      %p106 = scmp.ne.s32.totalorder %s97, %s98
      %p107 = scmp.eq.s32.totalorder %s19, 0
      %p108 = por %p106, %p107
      %p109 = scmp.ne.s32.totalorder %s97, %s98
      %p110 = scmp.eq.s32.totalorder %s20, 1
      %p111 = por %p109, %p110
      %p113 = scmp.ne.s32.totalorder %s98, %s112
      %p114 = scmp.eq.s32.totalorder %s20, 0
      %p115 = por %p113, %p114
      %s116 = ssub.s32 %s14, %s21
      %p117 = scmp.eq.s32.totalorder %s116, 0
      %s119 = sadd.s32 %s118, 1
      %s120 = scalar_select %p117, %s118, %s119
      %p123 = pneg %p117
      %p124 = scmp.eq.s32.totalorder %s14, 1
      %p125 = por %p123, %p124
      %p126 = scmp.ne.s32.totalorder %s118, %s121
      %p127 = scmp.eq.s32.totalorder %s14, 0
      %p128 = por %p126, %p127
      %p129 = scmp.ne.s32.totalorder %s118, %s121
      %p130 = scmp.eq.s32.totalorder %s19, 1
      %p131 = por %p129, %p130
      %p132 = scmp.ne.s32.totalorder %s121, %s122
      %p133 = scmp.eq.s32.totalorder %s19, 0
      %p134 = por %p132, %p133
      %p135 = scmp.ne.s32.totalorder %s121, %s122
      %p136 = scmp.eq.s32.totalorder %s20, 1
      %p137 = por %p135, %p136
      %p139 = scmp.ne.s32.totalorder %s122, %s138
      %p140 = scmp.eq.s32.totalorder %s20, 0
      %p141 = por %p139, %p140
      %p142 = scmp.le.s32.totalorder 1, %s14
      %p143 = scmp.lt.s32.totalorder %s14, 3
      %p144 = pnand %p142, %p143
      %p145 = pneg %p144
      // Predicated region
      $region9: #{tpu_custom_call.1} parent=5 // pred_check
        _
      $region10: #{tpu_custom_call.1} parent=5 // pred_check_branch
        %147 = sbr.rel (%p144) target = $region12
      $region11: #{tpu_custom_call.1} parent=5 // pred_region
        %s148 = ssub.s32 %s14, 1
        // Predicated region
        $region13: #{tpu_custom_call.1} parent=11 // pred_check
          %p149 = pneg %p61
        $region14: #{tpu_custom_call.1} parent=11 // pred_check_branch
          %151 = sbr.rel (%p149) target = $region16
        $region15: #{tpu_custom_call.1} parent=11 // pred_region
          %s153 = ssub.s32 4096, 4096
          %154 = vsyncadd [#allocation3], %s153
          %s155 = sshll.u32 [#allocation2], 4
          %s156 = int_to_ptr.vmem [resolvable:$true] %s155
          %161 = dma.hbm_to_vmem [thread:$0]  %s1, 4096, %s156, [#allocation3], 128, 128, 8
        $region16: #{tpu_custom_call.1} parent=11 // pred_fallthru
          _
        // Predicated region
        $region17: #{tpu_custom_call.1} parent=11 // pred_check
          %p162 = pneg %p108
        $region18: #{tpu_custom_call.1} parent=11 // pred_check_branch
          %164 = sbr.rel (%p162) target = $region20
        $region19: #{tpu_custom_call.1} parent=11 // pred_region
          _
        $region20: #{tpu_custom_call.1} parent=11 // pred_fallthru
          _
      $region12: #{tpu_custom_call.1} parent=5 // pred_fallthru
        _
      %p165 = scmp.lt.s32.totalorder %s14, 2
      // Predicated region
      $region21: #{tpu_custom_call.1} parent=5 // pred_check
        %p166 = pneg %p165
      $region22: #{tpu_custom_call.1} parent=5 // pred_check_branch
        %168 = sbr.rel (%p166) target = $region24
      $region23: #{tpu_custom_call.1} parent=5 // pred_region
        // Predicated region
        $region25: #{tpu_custom_call.1} parent=23 // pred_check
          %p169 = pneg %p34
        $region26: #{tpu_custom_call.1} parent=23 // pred_check_branch
          %171 = sbr.rel (%p169) target = $region28
        $region27: #{tpu_custom_call.1} parent=23 // pred_region
          %s172 = smul.u32 16, %s14
          %p173 = scmp.lt.s32.totalorder %s172, 31
          %s174 = scalar_select %p173, %s172, 31
          %s175 = smul.addr %s174, 8
          %s176 = scalar_lea.vmem %s0, %s175
          %s177 = smul.u32 16, %s14
        $region28: #{tpu_custom_call.1} parent=23 // pred_fallthru
          _
        // Predicated region
        $region29: #{tpu_custom_call.1} parent=23 // pred_check
          %p178 = pneg %p81
        $region30: #{tpu_custom_call.1} parent=23 // pred_check_branch
          %180 = sbr.rel (%p178) target = $region32
        $region31: #{tpu_custom_call.1} parent=23 // pred_region
          %s181 = smul.u32 16, %s14
          %p182 = scmp.lt.s32.totalorder %s181, 31
          %s183 = scalar_select %p182, %s181, 31
          %s184 = smul.addr %s183, 8
          %s185 = scalar_lea.vmem %s2, %s184
          %s186 = smul.u32 16, %s14
        $region32: #{tpu_custom_call.1} parent=23 // pred_fallthru
          _
      $region24: #{tpu_custom_call.1} parent=5 // pred_fallthru
        _
      %p187 = scmp.le.s32.totalorder 1, %s14
      %p188 = scmp.lt.s32.totalorder %s14, 3
      %p189 = pnand %p187, %p188
      %p190 = pneg %p189
      // Predicated region
      $region33: #{tpu_custom_call.1} parent=5 // pred_check
        _
      $region34: #{tpu_custom_call.1} parent=5 // pred_check_branch
        %192 = sbr.rel (%p189) target = $region36
      $region35: #{tpu_custom_call.1} parent=5 // pred_region
        %s193 = ssub.s32 %s14, 1
        // Predicated region
        $region37: #{tpu_custom_call.1} parent=35 // pred_check
          %p194 = pneg %p61
        $region38: #{tpu_custom_call.1} parent=35 // pred_check_branch
          %196 = sbr.rel (%p194) target = $region40
        $region39: #{tpu_custom_call.1} parent=35 // pred_region
          %197 = dma.done [#allocation3], 4096
        $region40: #{tpu_custom_call.1} parent=35 // pred_fallthru
          _
        %s198 = smul.u32 16, %s19
        %p199 = scmp.lt.s32.totalorder %s198, 31
        %s200 = scalar_select %p199, %s198, 31
        %s201 = smul.addr %s200, 8
        %s202 = scalar_lea.vmem %s0, %s201
        %p203 = pneg %p40
        %p204 = pneg %p37
        %p205 = pneg %p61
        %p206 = pneg %p58
        %s207 = smul.u32 16, %s19
        %p208 = scmp.lt.s32.totalorder %s207, 31
        %s209 = scalar_select %p208, %s207, 31
        %s210 = smul.addr %s209, 8
        %s211 = scalar_lea.vmem %s2, %s210
        %p212 = pneg %p87
        %p213 = pneg %p84
        %p214 = pneg %p108
        %p215 = pneg %p105
        %p216 = pneg %p134
        %p217 = pneg %p131
        %s218 = sand.u32 %s121, 1
        %s219 = scalar_lea.sflag [#allocation4], %s218
        %s220 = sand.u32 %s121, 1
        %s221 = smul.addr %s220, 2
        %s222 = scalar_lea.vmem [#allocation5], %s221
        %s223 = smul.u32 16, %s19
        %p224 = scmp.lt.s32.totalorder %s223, 31
        %s225 = scalar_select %p224, %s223, 31
        %s226 = smul.addr %s225, 8
        %s227 = scalar_lea.vmem %s0, %s226
        %s228 = smul.u32 16, %s19
        %s229 = smul.u32 16, %s19
        %p230 = scmp.lt.s32.totalorder %s229, 31
        %s231 = scalar_select %p230, %s229, 31
        %s232 = smul.addr %s231, 8
        %s233 = scalar_lea.vmem %s2, %s232
        %s234 = smul.u32 16, %s19
        %s235 = smul.u32 %s19, 128
        %v236 = vld [vmem:[%s227] sm:$0xff]
        %v237 = vld [vmem:[%s227 + $0x8] sm:$0xff]
        %v238 = vld [vmem:[%s227 + $0x10] sm:$0xff]
        %v239 = vld [vmem:[%s227 + $0x18] sm:$0xff]
        %v240 = vld [vmem:[%s227 + $0x20] sm:$0xff]
        %v241 = vld [vmem:[%s227 + $0x28] sm:$0xff]
        %v242 = vld [vmem:[%s227 + $0x30] sm:$0xff]
        %v243 = vld [vmem:[%s227 + $0x38] sm:$0xff]
        %v244 = vld [vmem:[%s227 + $0x40] sm:$0xff]
        %v245 = vld [vmem:[%s227 + $0x48] sm:$0xff]
        %v246 = vld [vmem:[%s227 + $0x50] sm:$0xff]
        %v247 = vld [vmem:[%s227 + $0x58] sm:$0xff]
        %v248 = vld [vmem:[%s227 + $0x60] sm:$0xff]
        %v249 = vld [vmem:[%s227 + $0x68] sm:$0xff]
        %v250 = vld [vmem:[%s227 + $0x70] sm:$0xff]
        %v251 = vld [vmem:[%s227 + $0x78] sm:$0xff]
        %v252 = vmul.f32 %v236, %v236
        %v253 = vmul.f32 %v237, %v237
        %v254 = vmul.f32 %v238, %v238
        %v255 = vmul.f32 %v239, %v239
        %v256 = vmul.f32 %v240, %v240
        %v257 = vmul.f32 %v241, %v241
        %v258 = vmul.f32 %v242, %v242
        %v259 = vmul.f32 %v243, %v243
        %v260 = vmul.f32 %v244, %v244
        %v261 = vmul.f32 %v245, %v245
        %v262 = vmul.f32 %v246, %v246
        %v263 = vmul.f32 %v247, %v247
        %v264 = vmul.f32 %v248, %v248
        %v265 = vmul.f32 %v249, %v249
        %v266 = vmul.f32 %v250, %v250
        %v267 = vmul.f32 %v251, %v251
        %268 = vadd.xlane.f32.xlu0 %v252
        %v269 = vpop.xlane.xlu0 %268
        %270 = vadd.xlane.f32.xlu0 %v253
        %v271 = vpop.xlane.xlu0 %270
        %272 = vadd.xlane.f32.xlu0 %v254
        %v273 = vpop.xlane.xlu0 %272
        %274 = vadd.xlane.f32.xlu0 %v255
        %v275 = vpop.xlane.xlu0 %274
        %276 = vadd.xlane.f32.xlu0 %v256
        %v277 = vpop.xlane.xlu0 %276
        %278 = vadd.xlane.f32.xlu0 %v257
        %v279 = vpop.xlane.xlu0 %278
        %280 = vadd.xlane.f32.xlu0 %v258
        %v281 = vpop.xlane.xlu0 %280
        %282 = vadd.xlane.f32.xlu0 %v259
        %v283 = vpop.xlane.xlu0 %282
        %284 = vadd.xlane.f32.xlu0 %v260
        %v285 = vpop.xlane.xlu0 %284
        %286 = vadd.xlane.f32.xlu0 %v261
        %v287 = vpop.xlane.xlu0 %286
        %288 = vadd.xlane.f32.xlu0 %v262
        %v289 = vpop.xlane.xlu0 %288
        %290 = vadd.xlane.f32.xlu0 %v263
        %v291 = vpop.xlane.xlu0 %290
        %292 = vadd.xlane.f32.xlu0 %v264
        %v293 = vpop.xlane.xlu0 %292
        %294 = vadd.xlane.f32.xlu0 %v265
        %v295 = vpop.xlane.xlu0 %294
        %296 = vadd.xlane.f32.xlu0 %v266
        %v297 = vpop.xlane.xlu0 %296
        %298 = vadd.xlane.f32.xlu0 %v267
        %v299 = vpop.xlane.xlu0 %298
        %v300 = vmax.f32 %v269, 1e-24
        %v301 = vmax.f32 %v271, 1e-24
        %v302 = vmax.f32 %v273, 1e-24
        %v303 = vmax.f32 %v275, 1e-24
        %v304 = vmax.f32 %v277, 1e-24
        %v305 = vmax.f32 %v279, 1e-24
        %v306 = vmax.f32 %v281, 1e-24
        %v307 = vmax.f32 %v283, 1e-24
        %v308 = vmax.f32 %v285, 1e-24
        %v309 = vmax.f32 %v287, 1e-24
        %v310 = vmax.f32 %v289, 1e-24
        %v311 = vmax.f32 %v291, 1e-24
        %v312 = vmax.f32 %v293, 1e-24
        %v313 = vmax.f32 %v295, 1e-24
        %v314 = vmax.f32 %v297, 1e-24
        %v315 = vmax.f32 %v299, 1e-24
        %v316 = vrsqrt.pop %v300
        %v317 = vrsqrt.pop %v301
        %v318 = vrsqrt.pop %v302
        %v319 = vrsqrt.pop %v303
        %v320 = vrsqrt.pop %v304
        %v321 = vrsqrt.pop %v305
        %v322 = vrsqrt.pop %v306
        %v323 = vrsqrt.pop %v307
        %v324 = vrsqrt.pop %v308
        %v325 = vrsqrt.pop %v309
        %v326 = vrsqrt.pop %v310
        %v327 = vrsqrt.pop %v311
        %v328 = vrsqrt.pop %v312
        %v329 = vrsqrt.pop %v313
        %v330 = vrsqrt.pop %v314
        %v331 = vrsqrt.pop %v315
        %v332 = vmul.f32 %v316, 2.0
        %v333 = vmul.f32 %v317, 2.0
        %v334 = vmul.f32 %v318, 2.0
        %v335 = vmul.f32 %v319, 2.0
        %v336 = vmul.f32 %v320, 2.0
        %v337 = vmul.f32 %v321, 2.0
        %v338 = vmul.f32 %v322, 2.0
        %v339 = vmul.f32 %v323, 2.0
        %v340 = vmul.f32 %v324, 2.0
        %v341 = vmul.f32 %v325, 2.0
        %v342 = vmul.f32 %v326, 2.0
        %v343 = vmul.f32 %v327, 2.0
        %v344 = vmul.f32 %v328, 2.0
        %v345 = vmul.f32 %v329, 2.0
        %v346 = vmul.f32 %v330, 2.0
        %v347 = vmul.f32 %v331, 2.0
        %v348 = vmul.f32 %v236, %v332
        %v349 = vmul.f32 %v237, %v333
        %v350 = vmul.f32 %v238, %v334
        %v351 = vmul.f32 %v239, %v335
        %v352 = vmul.f32 %v240, %v336
        %v353 = vmul.f32 %v241, %v337
        %v354 = vmul.f32 %v242, %v338
        %v355 = vmul.f32 %v243, %v339
        %v356 = vmul.f32 %v244, %v340
        %v357 = vmul.f32 %v245, %v341
        %v358 = vmul.f32 %v246, %v342
        %v359 = vmul.f32 %v247, %v343
        %v360 = vmul.f32 %v248, %v344
        %v361 = vmul.f32 %v249, %v345
        %v362 = vmul.f32 %v250, %v346
        %v363 = vmul.f32 %v251, %v347
        %v364 = vld [vmem:[#allocation2] sm:$0xff]
        %v365 = vld [vmem:[#allocation2 + $0x8] sm:$0xff]
        %v366 = vld [vmem:[#allocation2 + $0x10] sm:$0xff]
        %v367 = vld [vmem:[#allocation2 + $0x18] sm:$0xff]
        %v368 = vld [vmem:[#allocation2 + $0x20] sm:$0xff]
        %v369 = vld [vmem:[#allocation2 + $0x28] sm:$0xff]
        %v370 = vld [vmem:[#allocation2 + $0x30] sm:$0xff]
        %v371 = vld [vmem:[#allocation2 + $0x38] sm:$0xff]
        %v372 = vld [vmem:[#allocation2 + $0x40] sm:$0xff]
        %v373 = vld [vmem:[#allocation2 + $0x48] sm:$0xff]
        %v374 = vld [vmem:[#allocation2 + $0x50] sm:$0xff]
        %v375 = vld [vmem:[#allocation2 + $0x58] sm:$0xff]
        %v376 = vld [vmem:[#allocation2 + $0x60] sm:$0xff]
        %v377 = vld [vmem:[#allocation2 + $0x68] sm:$0xff]
        %v378 = vld [vmem:[#allocation2 + $0x70] sm:$0xff]
        %v379 = vld [vmem:[#allocation2 + $0x78] sm:$0xff]
        %v380 = vld [vmem:[#allocation2 + $0x80] sm:$0xff]
        %v381 = vld [vmem:[#allocation2 + $0x88] sm:$0xff]
        %v382 = vld [vmem:[#allocation2 + $0x90] sm:$0xff]
        %v383 = vld [vmem:[#allocation2 + $0x98] sm:$0xff]
        %v384 = vld [vmem:[#allocation2 + $0xa0] sm:$0xff]
        %v385 = vld [vmem:[#allocation2 + $0xa8] sm:$0xff]
        %v386 = vld [vmem:[#allocation2 + $0xb0] sm:$0xff]
        %v387 = vld [vmem:[#allocation2 + $0xb8] sm:$0xff]
        %v388 = vld [vmem:[#allocation2 + $0xc0] sm:$0xff]
        %v389 = vld [vmem:[#allocation2 + $0xc8] sm:$0xff]
        %v390 = vld [vmem:[#allocation2 + $0xd0] sm:$0xff]
        %v391 = vld [vmem:[#allocation2 + $0xd8] sm:$0xff]
        %v392 = vld [vmem:[#allocation2 + $0xe0] sm:$0xff]
        %v393 = vld [vmem:[#allocation2 + $0xe8] sm:$0xff]
        %v394 = vld [vmem:[#allocation2 + $0xf0] sm:$0xff]
        %v395 = vld [vmem:[#allocation2 + $0xf8] sm:$0xff]
        %s396 = scalar_lea.vmem [#allocation2], %s235
        %v397 = vld [vmem:[%s396] sm:$0xff]
        %v398 = vld [vmem:[%s396 + $0x8] sm:$0xff]
        %v399 = vld [vmem:[%s396 + $0x10] sm:$0xff]
        %v400 = vld [vmem:[%s396 + $0x18] sm:$0xff]
        %v401 = vld [vmem:[%s396 + $0x20] sm:$0xff]
        %v402 = vld [vmem:[%s396 + $0x28] sm:$0xff]
        %v403 = vld [vmem:[%s396 + $0x30] sm:$0xff]
        %v404 = vld [vmem:[%s396 + $0x38] sm:$0xff]
        %v405 = vld [vmem:[%s396 + $0x40] sm:$0xff]
        %v406 = vld [vmem:[%s396 + $0x48] sm:$0xff]
        %v407 = vld [vmem:[%s396 + $0x50] sm:$0xff]
        %v408 = vld [vmem:[%s396 + $0x58] sm:$0xff]
        %v409 = vld [vmem:[%s396 + $0x60] sm:$0xff]
        %v410 = vld [vmem:[%s396 + $0x68] sm:$0xff]
        %v411 = vld [vmem:[%s396 + $0x70] sm:$0xff]
        %v412 = vld [vmem:[%s396 + $0x78] sm:$0xff]
        %v413 = vmul.f32 %v397, 2.0
        %v414 = vmul.f32 %v398, 2.0
        %v415 = vmul.f32 %v399, 2.0
        %v416 = vmul.f32 %v400, 2.0
        %v417 = vmul.f32 %v401, 2.0
        %v418 = vmul.f32 %v402, 2.0
        %v419 = vmul.f32 %v403, 2.0
        %v420 = vmul.f32 %v404, 2.0
        %v421 = vmul.f32 %v405, 2.0
        %v422 = vmul.f32 %v406, 2.0
        %v423 = vmul.f32 %v407, 2.0
        %v424 = vmul.f32 %v408, 2.0
        %v425 = vmul.f32 %v409, 2.0
        %v426 = vmul.f32 %v410, 2.0
        %v427 = vmul.f32 %v411, 2.0
        %v428 = vmul.f32 %v412, 2.0
        %429 = vmatprep.subr.mxu0 0.0
        %430 = vmatpush1.xpose.msra.mxu0 %v379
        %431 = vmatprep.subr.mxu0 0.0
        %432 = vmatpush1.xpose.msra.mxu0 %v378
        %433 = vmatprep.subr.mxu0 0.0
        %434 = vmatpush1.xpose.msra.mxu0 %v377
        %435 = vmatprep.subr.mxu0 0.0
        %436 = vmatpush1.xpose.msra.mxu0 %v376
        %437 = vmatprep.subr.mxu0 0.0
        %438 = vmatpush1.xpose.msra.mxu0 %v375
        %439 = vmatprep.subr.mxu0 0.0
        %440 = vmatpush1.xpose.msra.mxu0 %v374
        %441 = vmatprep.subr.mxu0 0.0
        %442 = vmatpush1.xpose.msra.mxu0 %v373
        %443 = vmatprep.subr.mxu0 0.0
        %444 = vmatpush1.xpose.msra.mxu0 %v372
        %445 = vmatprep.subr.mxu0 0.0
        %446 = vmatpush1.xpose.msra.mxu0 %v371
        %447 = vmatprep.subr.mxu0 0.0
        %448 = vmatpush1.xpose.msra.mxu0 %v370
        %449 = vmatprep.subr.mxu0 0.0
        %450 = vmatpush1.xpose.msra.mxu0 %v369
        %451 = vmatprep.subr.mxu0 0.0
        %452 = vmatpush1.xpose.msra.mxu0 %v368
        %453 = vmatprep.subr.mxu0 0.0
        %454 = vmatpush1.xpose.msra.mxu0 %v367
        %455 = vmatprep.subr.mxu0 0.0
        %456 = vmatpush1.xpose.msra.mxu0 %v366
        %457 = vmatprep.subr.mxu0 0.0
        %458 = vmatpush1.xpose.msra.mxu0 %v365
        %459 = vmatprep.subr.mxu0 0.0
        %460 = vmatpush1.xpose.msra.mxu0 %v364
        %461 = vmatprep.subr.mxu0 0.0
        %462 = vmatpush2.xpose.msra.mxu0 %v395
        %463 = vmatprep.subr.mxu0 0.0
        %464 = vmatpush2.xpose.msra.mxu0 %v394
        %465 = vmatprep.subr.mxu0 0.0
        %466 = vmatpush2.xpose.msra.mxu0 %v393
        %467 = vmatprep.subr.mxu0 0.0
        %468 = vmatpush2.xpose.msra.mxu0 %v392
        %469 = vmatprep.subr.mxu0 0.0
        %470 = vmatpush2.xpose.msra.mxu0 %v391
        %471 = vmatprep.subr.mxu0 0.0
        %472 = vmatpush2.xpose.msra.mxu0 %v390
        %473 = vmatprep.subr.mxu0 0.0
        %474 = vmatpush2.xpose.msra.mxu0 %v389
        %475 = vmatprep.subr.mxu0 0.0
        %476 = vmatpush2.xpose.msra.mxu0 %v388
        %477 = vmatprep.subr.mxu0 0.0
        %478 = vmatpush2.xpose.msra.mxu0 %v387
        %479 = vmatprep.subr.mxu0 0.0
        %480 = vmatpush2.xpose.msra.mxu0 %v386
        %481 = vmatprep.subr.mxu0 0.0
        %482 = vmatpush2.xpose.msra.mxu0 %v385
        %483 = vmatprep.subr.mxu0 0.0
        %484 = vmatpush2.xpose.msra.mxu0 %v384
        %485 = vmatprep.subr.mxu0 0.0
        %486 = vmatpush2.xpose.msra.mxu0 %v383
        %487 = vmatprep.subr.mxu0 0.0
        %488 = vmatpush2.xpose.msra.mxu0 %v382
        %489 = vmatprep.subr.mxu0 0.0
        %490 = vmatpush2.xpose.msra.mxu0 %v381
        %491 = vmatprep.subr.mxu0 0.0
        %492 = vmatpush2.xpose.msra.mxu0 %v380
        %493 = vmatprep.mubr.f32.mxu0 0.0
        %494 = vmatmul.mubr.f32.gmra.mxu0 %v348
        %v495 = vpop.f32.mrf.mxu0
        %v496 = vadd.f32 0.0, %v495
        %v497 = vpop.f32.mrf.mxu0
        %v498 = vadd.f32 0.0, %v497
        %499 = vmatprep.mubr.f32.mxu0 0.0
        %500 = vmatmul.mubr.f32.gmra.mxu0 %v349
        %v501 = vpop.f32.mrf.mxu0
        %v502 = vadd.f32 0.0, %v501
        %v503 = vpop.f32.mrf.mxu0
        %v504 = vadd.f32 0.0, %v503
        %505 = vmatprep.mubr.f32.mxu0 0.0
        %506 = vmatmul.mubr.f32.gmra.mxu0 %v350
        %v507 = vpop.f32.mrf.mxu0
        %v508 = vadd.f32 0.0, %v507
        %v509 = vpop.f32.mrf.mxu0
        %v510 = vadd.f32 0.0, %v509
        %511 = vmatprep.mubr.f32.mxu0 0.0
        %512 = vmatmul.mubr.f32.gmra.mxu0 %v351
        %v513 = vpop.f32.mrf.mxu0
        %v514 = vadd.f32 0.0, %v513
        %v515 = vpop.f32.mrf.mxu0
        %v516 = vadd.f32 0.0, %v515
        %517 = vmatprep.mubr.f32.mxu0 0.0
        %518 = vmatmul.mubr.f32.gmra.mxu0 %v352
        %v519 = vpop.f32.mrf.mxu0
        %v520 = vadd.f32 0.0, %v519
        %v521 = vpop.f32.mrf.mxu0
        %v522 = vadd.f32 0.0, %v521
        %523 = vmatprep.mubr.f32.mxu0 0.0
        %524 = vmatmul.mubr.f32.gmra.mxu0 %v353
        %v525 = vpop.f32.mrf.mxu0
        %v526 = vadd.f32 0.0, %v525
        %v527 = vpop.f32.mrf.mxu0
        %v528 = vadd.f32 0.0, %v527
        %529 = vmatprep.mubr.f32.mxu0 0.0
        %530 = vmatmul.mubr.f32.gmra.mxu0 %v354
        %v531 = vpop.f32.mrf.mxu0
        %v532 = vadd.f32 0.0, %v531
        %v533 = vpop.f32.mrf.mxu0
        %v534 = vadd.f32 0.0, %v533
        %535 = vmatprep.mubr.f32.mxu0 0.0
        %536 = vmatmul.mubr.f32.gmra.mxu0 %v355
        %v537 = vpop.f32.mrf.mxu0
        %v538 = vadd.f32 0.0, %v537
        %v539 = vpop.f32.mrf.mxu0
        %v540 = vadd.f32 0.0, %v539
        %541 = vmatprep.mubr.f32.mxu0 0.0
        %542 = vmatmul.mubr.f32.gmra.mxu0 %v356
        %v543 = vpop.f32.mrf.mxu0
        %v544 = vadd.f32 0.0, %v543
        %v545 = vpop.f32.mrf.mxu0
        %v546 = vadd.f32 0.0, %v545
        %547 = vmatprep.mubr.f32.mxu0 0.0
        %548 = vmatmul.mubr.f32.gmra.mxu0 %v357
        %v549 = vpop.f32.mrf.mxu0
        %v550 = vadd.f32 0.0, %v549
        %v551 = vpop.f32.mrf.mxu0
        %v552 = vadd.f32 0.0, %v551
        %553 = vmatprep.mubr.f32.mxu0 0.0
        %554 = vmatmul.mubr.f32.gmra.mxu0 %v358
        %v555 = vpop.f32.mrf.mxu0
        %v556 = vadd.f32 0.0, %v555
        %v557 = vpop.f32.mrf.mxu0
        %v558 = vadd.f32 0.0, %v557
        %559 = vmatprep.mubr.f32.mxu0 0.0
        %560 = vmatmul.mubr.f32.gmra.mxu0 %v359
        %v561 = vpop.f32.mrf.mxu0
        %v562 = vadd.f32 0.0, %v561
        %v563 = vpop.f32.mrf.mxu0
        %v564 = vadd.f32 0.0, %v563
        %565 = vmatprep.mubr.f32.mxu0 0.0
        %566 = vmatmul.mubr.f32.gmra.mxu0 %v360
        %v567 = vpop.f32.mrf.mxu0
        %v568 = vadd.f32 0.0, %v567
        %v569 = vpop.f32.mrf.mxu0
        %v570 = vadd.f32 0.0, %v569
        %571 = vmatprep.mubr.f32.mxu0 0.0
        %572 = vmatmul.mubr.f32.gmra.mxu0 %v361
        %v573 = vpop.f32.mrf.mxu0
        %v574 = vadd.f32 0.0, %v573
        %v575 = vpop.f32.mrf.mxu0
        %v576 = vadd.f32 0.0, %v575
        %577 = vmatprep.mubr.f32.mxu0 0.0
        %578 = vmatmul.mubr.f32.gmra.mxu0 %v362
        %v579 = vpop.f32.mrf.mxu0
        %v580 = vadd.f32 0.0, %v579
        %v581 = vpop.f32.mrf.mxu0
        %v582 = vadd.f32 0.0, %v581
        %583 = vmatprep.mubr.f32.mxu0 0.0
        %584 = vmatmul.mubr.f32.gmra.mxu0 %v363
        %v585 = vpop.f32.mrf.mxu0
        %v586 = vadd.f32 0.0, %v585
        %v587 = vpop.f32.mrf.mxu0
        %v588 = vadd.f32 0.0, %v587
        %589 = vdwg.mxu0
        %590 = vmatprep.subr.mxu0 0.0
        %591 = vmatpush1.xpose.msra.mxu0 %v379
        %592 = vmatprep.subr.mxu0 0.0
        %593 = vmatpush1.xpose.msra.mxu0 %v378
        %594 = vmatprep.subr.mxu0 0.0
        %595 = vmatpush1.xpose.msra.mxu0 %v377
        %596 = vmatprep.subr.mxu0 0.0
        %597 = vmatpush1.xpose.msra.mxu0 %v376
        %598 = vmatprep.subr.mxu0 0.0
        %599 = vmatpush1.xpose.msra.mxu0 %v375
        %600 = vmatprep.subr.mxu0 0.0
        %601 = vmatpush1.xpose.msra.mxu0 %v374
        %602 = vmatprep.subr.mxu0 0.0
        %603 = vmatpush1.xpose.msra.mxu0 %v373
        %604 = vmatprep.subr.mxu0 0.0
        %605 = vmatpush1.xpose.msra.mxu0 %v372
        %606 = vmatprep.subr.mxu0 0.0
        %607 = vmatpush1.xpose.msra.mxu0 %v371
        %608 = vmatprep.subr.mxu0 0.0
        %609 = vmatpush1.xpose.msra.mxu0 %v370
        %610 = vmatprep.subr.mxu0 0.0
        %611 = vmatpush1.xpose.msra.mxu0 %v369
        %612 = vmatprep.subr.mxu0 0.0
        %613 = vmatpush1.xpose.msra.mxu0 %v368
        %614 = vmatprep.subr.mxu0 0.0
        %615 = vmatpush1.xpose.msra.mxu0 %v367
        %616 = vmatprep.subr.mxu0 0.0
        %617 = vmatpush1.xpose.msra.mxu0 %v366
        %618 = vmatprep.subr.mxu0 0.0
        %619 = vmatpush1.xpose.msra.mxu0 %v365
        %620 = vmatprep.subr.mxu0 0.0
        %621 = vmatpush1.xpose.msra.mxu0 %v364
        %622 = vmatprep.subr.mxu0 0.0
        %623 = vmatpush2.xpose.msra.mxu0 %v395
        %624 = vmatprep.subr.mxu0 0.0
        %625 = vmatpush2.xpose.msra.mxu0 %v394
        %626 = vmatprep.subr.mxu0 0.0
        %627 = vmatpush2.xpose.msra.mxu0 %v393
        %628 = vmatprep.subr.mxu0 0.0
        %629 = vmatpush2.xpose.msra.mxu0 %v392
        %630 = vmatprep.subr.mxu0 0.0
        %631 = vmatpush2.xpose.msra.mxu0 %v391
        %632 = vmatprep.subr.mxu0 0.0
        %633 = vmatpush2.xpose.msra.mxu0 %v390
        %634 = vmatprep.subr.mxu0 0.0
        %635 = vmatpush2.xpose.msra.mxu0 %v389
        %636 = vmatprep.subr.mxu0 0.0
        %637 = vmatpush2.xpose.msra.mxu0 %v388
        %638 = vmatprep.subr.mxu0 0.0
        %639 = vmatpush2.xpose.msra.mxu0 %v387
        %640 = vmatprep.subr.mxu0 0.0
        %641 = vmatpush2.xpose.msra.mxu0 %v386
        %642 = vmatprep.subr.mxu0 0.0
        %643 = vmatpush2.xpose.msra.mxu0 %v385
        %644 = vmatprep.subr.mxu0 0.0
        %645 = vmatpush2.xpose.msra.mxu0 %v384
        %646 = vmatprep.subr.mxu0 0.0
        %647 = vmatpush2.xpose.msra.mxu0 %v383
        %648 = vmatprep.subr.mxu0 0.0
        %649 = vmatpush2.xpose.msra.mxu0 %v382
        %650 = vmatprep.subr.mxu0 0.0
        %651 = vmatpush2.xpose.msra.mxu0 %v381
        %652 = vmatprep.subr.mxu0 0.0
        %653 = vmatpush2.xpose.msra.mxu0 %v380
        %654 = vmatprep.mubr.f32.mxu0 0.0
        %655 = vmatmul.mubr.f32.gmra.mxu0 %v413
        %v656 = vpop.f32.mrf.mxu0
        %v657 = vadd.f32 0.0, %v656
        %v658 = vpop.f32.mrf.mxu0
        %v659 = vadd.f32 0.0, %v658
        %660 = vmatprep.mubr.f32.mxu0 0.0
        %661 = vmatmul.mubr.f32.gmra.mxu0 %v414
        %v662 = vpop.f32.mrf.mxu0
        %v663 = vadd.f32 0.0, %v662
        %v664 = vpop.f32.mrf.mxu0
        %v665 = vadd.f32 0.0, %v664
        %666 = vmatprep.mubr.f32.mxu0 0.0
        %667 = vmatmul.mubr.f32.gmra.mxu0 %v415
        %v668 = vpop.f32.mrf.mxu0
        %v669 = vadd.f32 0.0, %v668
        %v670 = vpop.f32.mrf.mxu0
        %v671 = vadd.f32 0.0, %v670
        %672 = vmatprep.mubr.f32.mxu0 0.0
        %673 = vmatmul.mubr.f32.gmra.mxu0 %v416
        %v674 = vpop.f32.mrf.mxu0
        %v675 = vadd.f32 0.0, %v674
        %v676 = vpop.f32.mrf.mxu0
        %v677 = vadd.f32 0.0, %v676
        %678 = vmatprep.mubr.f32.mxu0 0.0
        %679 = vmatmul.mubr.f32.gmra.mxu0 %v417
        %v680 = vpop.f32.mrf.mxu0
        %v681 = vadd.f32 0.0, %v680
        %v682 = vpop.f32.mrf.mxu0
        %v683 = vadd.f32 0.0, %v682
        %684 = vmatprep.mubr.f32.mxu0 0.0
        %685 = vmatmul.mubr.f32.gmra.mxu0 %v418
        %v686 = vpop.f32.mrf.mxu0
        %v687 = vadd.f32 0.0, %v686
        %v688 = vpop.f32.mrf.mxu0
        %v689 = vadd.f32 0.0, %v688
        %690 = vmatprep.mubr.f32.mxu0 0.0
        %691 = vmatmul.mubr.f32.gmra.mxu0 %v419
        %v692 = vpop.f32.mrf.mxu0
        %v693 = vadd.f32 0.0, %v692
        %v694 = vpop.f32.mrf.mxu0
        %v695 = vadd.f32 0.0, %v694
        %696 = vmatprep.mubr.f32.mxu0 0.0
        %697 = vmatmul.mubr.f32.gmra.mxu0 %v420
        %v698 = vpop.f32.mrf.mxu0
        %v699 = vadd.f32 0.0, %v698
        %v700 = vpop.f32.mrf.mxu0
        %v701 = vadd.f32 0.0, %v700
        %702 = vmatprep.mubr.f32.mxu0 0.0
        %703 = vmatmul.mubr.f32.gmra.mxu0 %v421
        %v704 = vpop.f32.mrf.mxu0
        %v705 = vadd.f32 0.0, %v704
        %v706 = vpop.f32.mrf.mxu0
        %v707 = vadd.f32 0.0, %v706
        %708 = vmatprep.mubr.f32.mxu0 0.0
        %709 = vmatmul.mubr.f32.gmra.mxu0 %v422
        %v710 = vpop.f32.mrf.mxu0
        %v711 = vadd.f32 0.0, %v710
        %v712 = vpop.f32.mrf.mxu0
        %v713 = vadd.f32 0.0, %v712
        %714 = vmatprep.mubr.f32.mxu0 0.0
        %715 = vmatmul.mubr.f32.gmra.mxu0 %v423
        %v716 = vpop.f32.mrf.mxu0
        %v717 = vadd.f32 0.0, %v716
        %v718 = vpop.f32.mrf.mxu0
        %v719 = vadd.f32 0.0, %v718
        %720 = vmatprep.mubr.f32.mxu0 0.0
        %721 = vmatmul.mubr.f32.gmra.mxu0 %v424
        %v722 = vpop.f32.mrf.mxu0
        %v723 = vadd.f32 0.0, %v722
        %v724 = vpop.f32.mrf.mxu0
        %v725 = vadd.f32 0.0, %v724
        %726 = vmatprep.mubr.f32.mxu0 0.0
        %727 = vmatmul.mubr.f32.gmra.mxu0 %v425
        %v728 = vpop.f32.mrf.mxu0
        %v729 = vadd.f32 0.0, %v728
        %v730 = vpop.f32.mrf.mxu0
        %v731 = vadd.f32 0.0, %v730
        %732 = vmatprep.mubr.f32.mxu0 0.0
        %733 = vmatmul.mubr.f32.gmra.mxu0 %v426
        %v734 = vpop.f32.mrf.mxu0
        %v735 = vadd.f32 0.0, %v734
        %v736 = vpop.f32.mrf.mxu0
        %v737 = vadd.f32 0.0, %v736
        %738 = vmatprep.mubr.f32.mxu0 0.0
        %739 = vmatmul.mubr.f32.gmra.mxu0 %v427
        %v740 = vpop.f32.mrf.mxu0
        %v741 = vadd.f32 0.0, %v740
        %v742 = vpop.f32.mrf.mxu0
        %v743 = vadd.f32 0.0, %v742
        %744 = vmatprep.mubr.f32.mxu0 0.0
        %745 = vmatmul.mubr.f32.gmra.mxu0 %v428
        %v746 = vpop.f32.mrf.mxu0
        %v747 = vadd.f32 0.0, %v746
        %v748 = vpop.f32.mrf.mxu0
        %v749 = vadd.f32 0.0, %v748
        %750 = vdwg.mxu0
        %v751 = vmax.f32 %v496, %v498
        %752 = vmax.xlane.f32.xlu0 %v751
        %v753 = vpop.xlane.xlu0 %752
        %v754 = vmax.f32 %v502, %v504
        %755 = vmax.xlane.f32.xlu0 %v754
        %v756 = vpop.xlane.xlu0 %755
        %v757 = vmax.f32 %v508, %v510
        %758 = vmax.xlane.f32.xlu0 %v757
        %v759 = vpop.xlane.xlu0 %758
        %v760 = vmax.f32 %v514, %v516
        %761 = vmax.xlane.f32.xlu0 %v760
        %v762 = vpop.xlane.xlu0 %761
        %v763 = vmax.f32 %v520, %v522
        %764 = vmax.xlane.f32.xlu0 %v763
        %v765 = vpop.xlane.xlu0 %764
        %v766 = vmax.f32 %v526, %v528
        %767 = vmax.xlane.f32.xlu0 %v766
        %v768 = vpop.xlane.xlu0 %767
        %v769 = vmax.f32 %v532, %v534
        %770 = vmax.xlane.f32.xlu0 %v769
        %v771 = vpop.xlane.xlu0 %770
        %v772 = vmax.f32 %v538, %v540
        %773 = vmax.xlane.f32.xlu0 %v772
        %v774 = vpop.xlane.xlu0 %773
        %v775 = vmax.f32 %v544, %v546
        %776 = vmax.xlane.f32.xlu0 %v775
        %v777 = vpop.xlane.xlu0 %776
        %v778 = vmax.f32 %v550, %v552
        %779 = vmax.xlane.f32.xlu0 %v778
        %v780 = vpop.xlane.xlu0 %779
        %v781 = vmax.f32 %v556, %v558
        %782 = vmax.xlane.f32.xlu0 %v781
        %v783 = vpop.xlane.xlu0 %782
        %v784 = vmax.f32 %v562, %v564
        %785 = vmax.xlane.f32.xlu0 %v784
        %v786 = vpop.xlane.xlu0 %785
        %v787 = vmax.f32 %v568, %v570
        %788 = vmax.xlane.f32.xlu0 %v787
        %v789 = vpop.xlane.xlu0 %788
        %v790 = vmax.f32 %v574, %v576
        %791 = vmax.xlane.f32.xlu0 %v790
        %v792 = vpop.xlane.xlu0 %791
        %v793 = vmax.f32 %v580, %v582
        %794 = vmax.xlane.f32.xlu0 %v793
        %v795 = vpop.xlane.xlu0 %794
        %v796 = vmax.f32 %v586, %v588
        %797 = vmax.xlane.f32.xlu0 %v796
        %v798 = vpop.xlane.xlu0 %797
        %v799 = vmax.f32 %v657, %v659
        %800 = vmax.xlane.f32.xlu0 %v799
        %v801 = vpop.xlane.xlu0 %800
        %v802 = vmax.f32 %v663, %v665
        %803 = vmax.xlane.f32.xlu0 %v802
        %v804 = vpop.xlane.xlu0 %803
        %v805 = vmax.f32 %v669, %v671
        %806 = vmax.xlane.f32.xlu0 %v805
        %v807 = vpop.xlane.xlu0 %806
        %v808 = vmax.f32 %v675, %v677
        %809 = vmax.xlane.f32.xlu0 %v808
        %v810 = vpop.xlane.xlu0 %809
        %v811 = vmax.f32 %v681, %v683
        %812 = vmax.xlane.f32.xlu0 %v811
        %v813 = vpop.xlane.xlu0 %812
        %v814 = vmax.f32 %v687, %v689
        %815 = vmax.xlane.f32.xlu0 %v814
        %v816 = vpop.xlane.xlu0 %815
        %v817 = vmax.f32 %v693, %v695
        %818 = vmax.xlane.f32.xlu0 %v817
        %v819 = vpop.xlane.xlu0 %818
        %v820 = vmax.f32 %v699, %v701
        %821 = vmax.xlane.f32.xlu0 %v820
        %v822 = vpop.xlane.xlu0 %821
        %v823 = vmax.f32 %v705, %v707
        %824 = vmax.xlane.f32.xlu0 %v823
        %v825 = vpop.xlane.xlu0 %824
        %v826 = vmax.f32 %v711, %v713
        %827 = vmax.xlane.f32.xlu0 %v826
        %v828 = vpop.xlane.xlu0 %827
        %v829 = vmax.f32 %v717, %v719
        %830 = vmax.xlane.f32.xlu0 %v829
        %v831 = vpop.xlane.xlu0 %830
        %v832 = vmax.f32 %v723, %v725
        %833 = vmax.xlane.f32.xlu0 %v832
        %v834 = vpop.xlane.xlu0 %833
        %v835 = vmax.f32 %v729, %v731
        %836 = vmax.xlane.f32.xlu0 %v835
        %v837 = vpop.xlane.xlu0 %836
        %v838 = vmax.f32 %v735, %v737
        %839 = vmax.xlane.f32.xlu0 %v838
        %v840 = vpop.xlane.xlu0 %839
        %v841 = vmax.f32 %v741, %v743
        %842 = vmax.xlane.f32.xlu0 %v841
        %v843 = vpop.xlane.xlu0 %842
        %v844 = vmax.f32 %v747, %v749
        %845 = vmax.xlane.f32.xlu0 %v844
        %v846 = vpop.xlane.xlu0 %845
        %v847 = vsub.f32 %v657, %v801
        %v848 = vsub.f32 %v659, %v801
        %v849 = vsub.f32 %v663, %v804
        %v850 = vsub.f32 %v665, %v804
        %v851 = vsub.f32 %v669, %v807
        %v852 = vsub.f32 %v671, %v807
        %v853 = vsub.f32 %v675, %v810
        %v854 = vsub.f32 %v677, %v810
        %v855 = vsub.f32 %v681, %v813
        %v856 = vsub.f32 %v683, %v813
        %v857 = vsub.f32 %v687, %v816
        %v858 = vsub.f32 %v689, %v816
        %v859 = vsub.f32 %v693, %v819
        %v860 = vsub.f32 %v695, %v819
        %v861 = vsub.f32 %v699, %v822
        %v862 = vsub.f32 %v701, %v822
        %v863 = vsub.f32 %v705, %v825
        %v864 = vsub.f32 %v707, %v825
        %v865 = vsub.f32 %v711, %v828
        %v866 = vsub.f32 %v713, %v828
        %v867 = vsub.f32 %v717, %v831
        %v868 = vsub.f32 %v719, %v831
        %v869 = vsub.f32 %v723, %v834
        %v870 = vsub.f32 %v725, %v834
        %v871 = vsub.f32 %v729, %v837
        %v872 = vsub.f32 %v731, %v837
        %v873 = vsub.f32 %v735, %v840
        %v874 = vsub.f32 %v737, %v840
        %v875 = vsub.f32 %v741, %v843
        %v876 = vsub.f32 %v743, %v843
        %v877 = vsub.f32 %v747, %v846
        %v878 = vsub.f32 %v749, %v846
        %v879 = vmul.f32 %v847, 1.442695
        %v880 = vpow.pop %v879
        %v881 = vmul.f32 %v848, 1.442695
        %v882 = vpow.pop %v881
        %v883 = vmul.f32 %v849, 1.442695
        %v884 = vpow.pop %v883
        %v885 = vmul.f32 %v850, 1.442695
        %v886 = vpow.pop %v885
        %v887 = vmul.f32 %v851, 1.442695
        %v888 = vpow.pop %v887
        %v889 = vmul.f32 %v852, 1.442695
        %v890 = vpow.pop %v889
        %v891 = vmul.f32 %v853, 1.442695
        %v892 = vpow.pop %v891
        %v893 = vmul.f32 %v854, 1.442695
        %v894 = vpow.pop %v893
        %v895 = vmul.f32 %v855, 1.442695
        %v896 = vpow.pop %v895
        %v897 = vmul.f32 %v856, 1.442695
        %v898 = vpow.pop %v897
        %v899 = vmul.f32 %v857, 1.442695
        %v900 = vpow.pop %v899
        %v901 = vmul.f32 %v858, 1.442695
        %v902 = vpow.pop %v901
        %v903 = vmul.f32 %v859, 1.442695
        %v904 = vpow.pop %v903
        %v905 = vmul.f32 %v860, 1.442695
        %v906 = vpow.pop %v905
        %v907 = vmul.f32 %v861, 1.442695
        %v908 = vpow.pop %v907
        %v909 = vmul.f32 %v862, 1.442695
        %v910 = vpow.pop %v909
        %v911 = vmul.f32 %v863, 1.442695
        %v912 = vpow.pop %v911
        %v913 = vmul.f32 %v864, 1.442695
        %v914 = vpow.pop %v913
        %v915 = vmul.f32 %v865, 1.442695
        %v916 = vpow.pop %v915
        %v917 = vmul.f32 %v866, 1.442695
        %v918 = vpow.pop %v917
        %v919 = vmul.f32 %v867, 1.442695
        %v920 = vpow.pop %v919
        %v921 = vmul.f32 %v868, 1.442695
        %v922 = vpow.pop %v921
        %v923 = vmul.f32 %v869, 1.442695
        %v924 = vpow.pop %v923
        %v925 = vmul.f32 %v870, 1.442695
        %v926 = vpow.pop %v925
        %v927 = vmul.f32 %v871, 1.442695
        %v928 = vpow.pop %v927
        %v929 = vmul.f32 %v872, 1.442695
        %v930 = vpow.pop %v929
        %v931 = vmul.f32 %v873, 1.442695
        %v932 = vpow.pop %v931
        %v933 = vmul.f32 %v874, 1.442695
        %v934 = vpow.pop %v933
        %v935 = vmul.f32 %v875, 1.442695
        %v936 = vpow.pop %v935
        %v937 = vmul.f32 %v876, 1.442695
        %v938 = vpow.pop %v937
        %v939 = vmul.f32 %v877, 1.442695
        %v940 = vpow.pop %v939
        %v941 = vmul.f32 %v878, 1.442695
        %v942 = vpow.pop %v941
        %v943 = vmul.f32 %v397, %v397
        %v944 = vmul.f32 %v398, %v398
        %v945 = vmul.f32 %v399, %v399
        %v946 = vmul.f32 %v400, %v400
        %v947 = vmul.f32 %v401, %v401
        %v948 = vmul.f32 %v402, %v402
        %v949 = vmul.f32 %v403, %v403
        %v950 = vmul.f32 %v404, %v404
        %v951 = vmul.f32 %v405, %v405
        %v952 = vmul.f32 %v406, %v406
        %v953 = vmul.f32 %v407, %v407
        %v954 = vmul.f32 %v408, %v408
        %v955 = vmul.f32 %v409, %v409
        %v956 = vmul.f32 %v410, %v410
        %v957 = vmul.f32 %v411, %v411
        %v958 = vmul.f32 %v412, %v412
        %959 = vadd.xlane.f32.xlu0 %v943
        %v960 = vpop.xlane.xlu0 %959
        %961 = vadd.xlane.f32.xlu0 %v944
        %v962 = vpop.xlane.xlu0 %961
        %963 = vadd.xlane.f32.xlu0 %v945
        %v964 = vpop.xlane.xlu0 %963
        %965 = vadd.xlane.f32.xlu0 %v946
        %v966 = vpop.xlane.xlu0 %965
        %967 = vadd.xlane.f32.xlu0 %v947
        %v968 = vpop.xlane.xlu0 %967
        %969 = vadd.xlane.f32.xlu0 %v948
        %v970 = vpop.xlane.xlu0 %969
        %971 = vadd.xlane.f32.xlu0 %v949
        %v972 = vpop.xlane.xlu0 %971
        %973 = vadd.xlane.f32.xlu0 %v950
        %v974 = vpop.xlane.xlu0 %973
        %975 = vadd.xlane.f32.xlu0 %v951
        %v976 = vpop.xlane.xlu0 %975
        %977 = vadd.xlane.f32.xlu0 %v952
        %v978 = vpop.xlane.xlu0 %977
        %979 = vadd.xlane.f32.xlu0 %v953
        %v980 = vpop.xlane.xlu0 %979
        %981 = vadd.xlane.f32.xlu0 %v954
        %v982 = vpop.xlane.xlu0 %981
        %983 = vadd.xlane.f32.xlu0 %v955
        %v984 = vpop.xlane.xlu0 %983
        %985 = vadd.xlane.f32.xlu0 %v956
        %v986 = vpop.xlane.xlu0 %985
        %987 = vadd.xlane.f32.xlu0 %v957
        %v988 = vpop.xlane.xlu0 %987
        %989 = vadd.xlane.f32.xlu0 %v958
        %v990 = vpop.xlane.xlu0 %989
        %v991 = vmul.f32 %v960, 2.0
        %v992 = vmul.f32 %v962, 2.0
        %v993 = vmul.f32 %v964, 2.0
        %v994 = vmul.f32 %v966, 2.0
        %v995 = vmul.f32 %v968, 2.0
        %v996 = vmul.f32 %v970, 2.0
        %v997 = vmul.f32 %v972, 2.0
        %v998 = vmul.f32 %v974, 2.0
        %v999 = vmul.f32 %v976, 2.0
        %v1000 = vmul.f32 %v978, 2.0
        %v1001 = vmul.f32 %v980, 2.0
        %v1002 = vmul.f32 %v982, 2.0
        %v1003 = vmul.f32 %v984, 2.0
        %v1004 = vmul.f32 %v986, 2.0
        %v1005 = vmul.f32 %v988, 2.0
        %v1006 = vmul.f32 %v990, 2.0
        %v1007 = vadd.f32 %v880, %v882
        %1008 = vadd.xlane.f32.xlu0 %v1007
        %v1009 = vpop.xlane.xlu0 %1008
        %v1010 = vadd.f32 %v884, %v886
        %1011 = vadd.xlane.f32.xlu0 %v1010
        %v1012 = vpop.xlane.xlu0 %1011
        %v1013 = vadd.f32 %v888, %v890
        %1014 = vadd.xlane.f32.xlu0 %v1013
        %v1015 = vpop.xlane.xlu0 %1014
        %v1016 = vadd.f32 %v892, %v894
        %1017 = vadd.xlane.f32.xlu0 %v1016
        %v1018 = vpop.xlane.xlu0 %1017
        %v1019 = vadd.f32 %v896, %v898
        %1020 = vadd.xlane.f32.xlu0 %v1019
        %v1021 = vpop.xlane.xlu0 %1020
        %v1022 = vadd.f32 %v900, %v902
        %1023 = vadd.xlane.f32.xlu0 %v1022
        %v1024 = vpop.xlane.xlu0 %1023
        %v1025 = vadd.f32 %v904, %v906
        %1026 = vadd.xlane.f32.xlu0 %v1025
        %v1027 = vpop.xlane.xlu0 %1026
        %v1028 = vadd.f32 %v908, %v910
        %1029 = vadd.xlane.f32.xlu0 %v1028
        %v1030 = vpop.xlane.xlu0 %1029
        %v1031 = vadd.f32 %v912, %v914
        %1032 = vadd.xlane.f32.xlu0 %v1031
        %v1033 = vpop.xlane.xlu0 %1032
        %v1034 = vadd.f32 %v916, %v918
        %1035 = vadd.xlane.f32.xlu0 %v1034
        %v1036 = vpop.xlane.xlu0 %1035
        %v1037 = vadd.f32 %v920, %v922
        %1038 = vadd.xlane.f32.xlu0 %v1037
        %v1039 = vpop.xlane.xlu0 %1038
        %v1040 = vadd.f32 %v924, %v926
        %1041 = vadd.xlane.f32.xlu0 %v1040
        %v1042 = vpop.xlane.xlu0 %1041
        %v1043 = vadd.f32 %v928, %v930
        %1044 = vadd.xlane.f32.xlu0 %v1043
        %v1045 = vpop.xlane.xlu0 %1044
        %v1046 = vadd.f32 %v932, %v934
        %1047 = vadd.xlane.f32.xlu0 %v1046
        %v1048 = vpop.xlane.xlu0 %1047
        %v1049 = vadd.f32 %v936, %v938
        %1050 = vadd.xlane.f32.xlu0 %v1049
        %v1051 = vpop.xlane.xlu0 %1050
        %v1052 = vadd.f32 %v940, %v942
        %1053 = vadd.xlane.f32.xlu0 %v1052
        %v1054 = vpop.xlane.xlu0 %1053
        %v1055 = vsub.f32 %v991, %v801
        %v1056 = vsub.f32 %v992, %v804
        %v1057 = vsub.f32 %v993, %v807
        %v1058 = vsub.f32 %v994, %v810
        %v1059 = vsub.f32 %v995, %v813
        %v1060 = vsub.f32 %v996, %v816
        %v1061 = vsub.f32 %v997, %v819
        %v1062 = vsub.f32 %v998, %v822
        %v1063 = vsub.f32 %v999, %v825
        %v1064 = vsub.f32 %v1000, %v828
        %v1065 = vsub.f32 %v1001, %v831
        %v1066 = vsub.f32 %v1002, %v834
        %v1067 = vsub.f32 %v1003, %v837
        %v1068 = vsub.f32 %v1004, %v840
        %v1069 = vsub.f32 %v1005, %v843
        %v1070 = vsub.f32 %v1006, %v846
        %v1071 = vmul.f32 %v1055, 1.442695
        %v1072 = vpow.pop %v1071
        %v1073 = vmul.f32 %v1056, 1.442695
        %v1074 = vpow.pop %v1073
        %v1075 = vmul.f32 %v1057, 1.442695
        %v1076 = vpow.pop %v1075
        %v1077 = vmul.f32 %v1058, 1.442695
        %v1078 = vpow.pop %v1077
        %v1079 = vmul.f32 %v1059, 1.442695
        %v1080 = vpow.pop %v1079
        %v1081 = vmul.f32 %v1060, 1.442695
        %v1082 = vpow.pop %v1081
        %v1083 = vmul.f32 %v1061, 1.442695
        %v1084 = vpow.pop %v1083
        %v1085 = vmul.f32 %v1062, 1.442695
        %v1086 = vpow.pop %v1085
        %v1087 = vmul.f32 %v1063, 1.442695
        %v1088 = vpow.pop %v1087
        %v1089 = vmul.f32 %v1064, 1.442695
        %v1090 = vpow.pop %v1089
        %v1091 = vmul.f32 %v1065, 1.442695
        %v1092 = vpow.pop %v1091
        %v1093 = vmul.f32 %v1066, 1.442695
        %v1094 = vpow.pop %v1093
        %v1095 = vmul.f32 %v1067, 1.442695
        %v1096 = vpow.pop %v1095
        %v1097 = vmul.f32 %v1068, 1.442695
        %v1098 = vpow.pop %v1097
        %v1099 = vmul.f32 %v1069, 1.442695
        %v1100 = vpow.pop %v1099
        %v1101 = vmul.f32 %v1070, 1.442695
        %v1102 = vpow.pop %v1101
        %v1103 = vsub.f32 %v1009, %v1072
        %v1104 = vsub.f32 %v1012, %v1074
        %v1105 = vsub.f32 %v1015, %v1076
        %v1106 = vsub.f32 %v1018, %v1078
        %v1107 = vsub.f32 %v1021, %v1080
        %v1108 = vsub.f32 %v1024, %v1082
        %v1109 = vsub.f32 %v1027, %v1084
        %v1110 = vsub.f32 %v1030, %v1086
        %v1111 = vsub.f32 %v1033, %v1088
        %v1112 = vsub.f32 %v1036, %v1090
        %v1113 = vsub.f32 %v1039, %v1092
        %v1114 = vsub.f32 %v1042, %v1094
        %v1115 = vsub.f32 %v1045, %v1096
        %v1116 = vsub.f32 %v1048, %v1098
        %v1117 = vsub.f32 %v1051, %v1100
        %v1118 = vsub.f32 %v1054, %v1102
        %v1119 = vlog2.pop %v1103
        %v1120 = vmul.f32 %v1119, 0.6931472
        %v1121 = vlog2.pop %v1104
        %v1122 = vmul.f32 %v1121, 0.6931472
        %v1123 = vlog2.pop %v1105
        %v1124 = vmul.f32 %v1123, 0.6931472
        %v1125 = vlog2.pop %v1106
        %v1126 = vmul.f32 %v1125, 0.6931472
        %v1127 = vlog2.pop %v1107
        %v1128 = vmul.f32 %v1127, 0.6931472
        %v1129 = vlog2.pop %v1108
        %v1130 = vmul.f32 %v1129, 0.6931472
        %v1131 = vlog2.pop %v1109
        %v1132 = vmul.f32 %v1131, 0.6931472
        %v1133 = vlog2.pop %v1110
        %v1134 = vmul.f32 %v1133, 0.6931472
        %v1135 = vlog2.pop %v1111
        %v1136 = vmul.f32 %v1135, 0.6931472
        %v1137 = vlog2.pop %v1112
        %v1138 = vmul.f32 %v1137, 0.6931472
        %v1139 = vlog2.pop %v1113
        %v1140 = vmul.f32 %v1139, 0.6931472
        %v1141 = vlog2.pop %v1114
        %v1142 = vmul.f32 %v1141, 0.6931472
        %v1143 = vlog2.pop %v1115
        %v1144 = vmul.f32 %v1143, 0.6931472
        %v1145 = vlog2.pop %v1116
        %v1146 = vmul.f32 %v1145, 0.6931472
        %v1147 = vlog2.pop %v1117
        %v1148 = vmul.f32 %v1147, 0.6931472
        %v1149 = vlog2.pop %v1118
        %v1150 = vmul.f32 %v1149, 0.6931472
        %v1151 = vadd.f32 %v753, %v1120
        %v1152 = vadd.f32 %v756, %v1122
        %v1153 = vadd.f32 %v759, %v1124
        %v1154 = vadd.f32 %v762, %v1126
        %v1155 = vadd.f32 %v765, %v1128
        %v1156 = vadd.f32 %v768, %v1130
        %v1157 = vadd.f32 %v771, %v1132
        %v1158 = vadd.f32 %v774, %v1134
        %v1159 = vadd.f32 %v777, %v1136
        %v1160 = vadd.f32 %v780, %v1138
        %v1161 = vadd.f32 %v783, %v1140
        %v1162 = vadd.f32 %v786, %v1142
        %v1163 = vadd.f32 %v789, %v1144
        %v1164 = vadd.f32 %v792, %v1146
        %v1165 = vadd.f32 %v795, %v1148
        %v1166 = vadd.f32 %v798, %v1150
        %v1167 = vld [vmem:[%s233] sm:$0xff]
        %v1168 = vld [vmem:[%s233 + $0x8] sm:$0xff]
        %v1169 = vld [vmem:[%s233 + $0x10] sm:$0xff]
        %v1170 = vld [vmem:[%s233 + $0x18] sm:$0xff]
        %v1171 = vld [vmem:[%s233 + $0x20] sm:$0xff]
        %v1172 = vld [vmem:[%s233 + $0x28] sm:$0xff]
        %v1173 = vld [vmem:[%s233 + $0x30] sm:$0xff]
        %v1174 = vld [vmem:[%s233 + $0x38] sm:$0xff]
        %v1175 = vld [vmem:[%s233 + $0x40] sm:$0xff]
        %v1176 = vld [vmem:[%s233 + $0x48] sm:$0xff]
        %v1177 = vld [vmem:[%s233 + $0x50] sm:$0xff]
        %v1178 = vld [vmem:[%s233 + $0x58] sm:$0xff]
        %v1179 = vld [vmem:[%s233 + $0x60] sm:$0xff]
        %v1180 = vld [vmem:[%s233 + $0x68] sm:$0xff]
        %v1181 = vld [vmem:[%s233 + $0x70] sm:$0xff]
        %v1182 = vld [vmem:[%s233 + $0x78] sm:$0xff]
        %v1183 = vld [vmem:[%s3] sm:$0x3]
        %1184 = vset.pattern.permute.xlu0 0
        %1185 = vperm.xlu0 %1184, %v1167
        %v1186 = vpop.permute.xlu0 %1185
        %1187 = vset.pattern.permute.xlu0 0
        %1188 = vperm.xlu0 %1187, %v1168
        %v1189 = vpop.permute.xlu0 %1188
        %1190 = vset.pattern.permute.xlu0 0
        %1191 = vperm.xlu0 %1190, %v1169
        %v1192 = vpop.permute.xlu0 %1191
        %1193 = vset.pattern.permute.xlu0 0
        %1194 = vperm.xlu0 %1193, %v1170
        %v1195 = vpop.permute.xlu0 %1194
        %1196 = vset.pattern.permute.xlu0 0
        %1197 = vperm.xlu0 %1196, %v1171
        %v1198 = vpop.permute.xlu0 %1197
        %1199 = vset.pattern.permute.xlu0 0
        %1200 = vperm.xlu0 %1199, %v1172
        %v1201 = vpop.permute.xlu0 %1200
        %1202 = vset.pattern.permute.xlu0 0
        %1203 = vperm.xlu0 %1202, %v1173
        %v1204 = vpop.permute.xlu0 %1203
        %1205 = vset.pattern.permute.xlu0 0
        %1206 = vperm.xlu0 %1205, %v1174
        %v1207 = vpop.permute.xlu0 %1206
        %1208 = vset.pattern.permute.xlu0 0
        %1209 = vperm.xlu0 %1208, %v1175
        %v1210 = vpop.permute.xlu0 %1209
        %1211 = vset.pattern.permute.xlu0 0
        %1212 = vperm.xlu0 %1211, %v1176
        %v1213 = vpop.permute.xlu0 %1212
        %1214 = vset.pattern.permute.xlu0 0
        %1215 = vperm.xlu0 %1214, %v1177
        %v1216 = vpop.permute.xlu0 %1215
        %1217 = vset.pattern.permute.xlu0 0
        %1218 = vperm.xlu0 %1217, %v1178
        %v1219 = vpop.permute.xlu0 %1218
        %1220 = vset.pattern.permute.xlu0 0
        %1221 = vperm.xlu0 %1220, %v1179
        %v1222 = vpop.permute.xlu0 %1221
        %1223 = vset.pattern.permute.xlu0 0
        %1224 = vperm.xlu0 %1223, %v1180
        %v1225 = vpop.permute.xlu0 %1224
        %1226 = vset.pattern.permute.xlu0 0
        %1227 = vperm.xlu0 %1226, %v1181
        %v1228 = vpop.permute.xlu0 %1227
        %1229 = vset.pattern.permute.xlu0 0
        %1230 = vperm.xlu0 %1229, %v1182
        %v1231 = vpop.permute.xlu0 %1230
        %v1232 = vlaneseq
        %v1233 = vshrl.u32 %v1232, 7
        %v1234 = vsub.s32 0, %v1233
        %v1235 = vrot.slane %v1183, %v1234
        %v1236 = vlaneseq
        %v1237 = vshrl.u32 %v1236, 7
        %v1238 = vsub.s32 1, %v1237
        %v1239 = vrot.slane %v1183, %v1238
        %vm1240 = vcmp.eq.s32.totalorder %v1186, %v1235
        %vm1241 = vcmp.eq.s32.totalorder %v1186, %v1239
        %vm1242 = vcmp.eq.s32.totalorder %v1189, %v1235
        %vm1243 = vcmp.eq.s32.totalorder %v1189, %v1239
        %vm1244 = vcmp.eq.s32.totalorder %v1192, %v1235
        %vm1245 = vcmp.eq.s32.totalorder %v1192, %v1239
        %vm1246 = vcmp.eq.s32.totalorder %v1195, %v1235
        %vm1247 = vcmp.eq.s32.totalorder %v1195, %v1239
        %vm1248 = vcmp.eq.s32.totalorder %v1198, %v1235
        %vm1249 = vcmp.eq.s32.totalorder %v1198, %v1239
        %vm1250 = vcmp.eq.s32.totalorder %v1201, %v1235
        %vm1251 = vcmp.eq.s32.totalorder %v1201, %v1239
        %vm1252 = vcmp.eq.s32.totalorder %v1204, %v1235
        %vm1253 = vcmp.eq.s32.totalorder %v1204, %v1239
        %vm1254 = vcmp.eq.s32.totalorder %v1207, %v1235
        %vm1255 = vcmp.eq.s32.totalorder %v1207, %v1239
        %vm1256 = vcmp.eq.s32.totalorder %v1210, %v1235
        %vm1257 = vcmp.eq.s32.totalorder %v1210, %v1239
        %vm1258 = vcmp.eq.s32.totalorder %v1213, %v1235
        %vm1259 = vcmp.eq.s32.totalorder %v1213, %v1239
        %vm1260 = vcmp.eq.s32.totalorder %v1216, %v1235
        %vm1261 = vcmp.eq.s32.totalorder %v1216, %v1239
        %vm1262 = vcmp.eq.s32.totalorder %v1219, %v1235
        %vm1263 = vcmp.eq.s32.totalorder %v1219, %v1239
        %vm1264 = vcmp.eq.s32.totalorder %v1222, %v1235
        %vm1265 = vcmp.eq.s32.totalorder %v1222, %v1239
        %vm1266 = vcmp.eq.s32.totalorder %v1225, %v1235
        %vm1267 = vcmp.eq.s32.totalorder %v1225, %v1239
        %vm1268 = vcmp.eq.s32.totalorder %v1228, %v1235
        %vm1269 = vcmp.eq.s32.totalorder %v1228, %v1239
        %vm1270 = vcmp.eq.s32.totalorder %v1231, %v1235
        %vm1271 = vcmp.eq.s32.totalorder %v1231, %v1239
        %v1272 = vsub.f32 %v496, %v1151
        %v1273 = vsub.f32 %v498, %v1151
        %v1274 = vsub.f32 %v502, %v1152
        %v1275 = vsub.f32 %v504, %v1152
        %v1276 = vsub.f32 %v508, %v1153
        %v1277 = vsub.f32 %v510, %v1153
        %v1278 = vsub.f32 %v514, %v1154
        %v1279 = vsub.f32 %v516, %v1154
        %v1280 = vsub.f32 %v520, %v1155
        %v1281 = vsub.f32 %v522, %v1155
        %v1282 = vsub.f32 %v526, %v1156
        %v1283 = vsub.f32 %v528, %v1156
        %v1284 = vsub.f32 %v532, %v1157
        %v1285 = vsub.f32 %v534, %v1157
        %v1286 = vsub.f32 %v538, %v1158
        %v1287 = vsub.f32 %v540, %v1158
        %v1288 = vsub.f32 %v544, %v1159
        %v1289 = vsub.f32 %v546, %v1159
        %v1290 = vsub.f32 %v550, %v1160
        %v1291 = vsub.f32 %v552, %v1160
        %v1292 = vsub.f32 %v556, %v1161
        %v1293 = vsub.f32 %v558, %v1161
        %v1294 = vsub.f32 %v562, %v1162
        %v1295 = vsub.f32 %v564, %v1162
        %v1296 = vsub.f32 %v568, %v1163
        %v1297 = vsub.f32 %v570, %v1163
        %v1298 = vsub.f32 %v574, %v1164
        %v1299 = vsub.f32 %v576, %v1164
        %v1300 = vsub.f32 %v580, %v1165
        %v1301 = vsub.f32 %v582, %v1165
        %v1302 = vsub.f32 %v586, %v1166
        %v1303 = vsub.f32 %v588, %v1166
        %v1304 = vsel %vm1240, %v1272, 0.0
        %v1305 = vsel %vm1241, %v1273, 0.0
        %v1306 = vsel %vm1242, %v1274, 0.0
        %v1307 = vsel %vm1243, %v1275, 0.0
        %v1308 = vsel %vm1244, %v1276, 0.0
        %v1309 = vsel %vm1245, %v1277, 0.0
        %v1310 = vsel %vm1246, %v1278, 0.0
        %v1311 = vsel %vm1247, %v1279, 0.0
        %v1312 = vsel %vm1248, %v1280, 0.0
        %v1313 = vsel %vm1249, %v1281, 0.0
        %v1314 = vsel %vm1250, %v1282, 0.0
        %v1315 = vsel %vm1251, %v1283, 0.0
        %v1316 = vsel %vm1252, %v1284, 0.0
        %v1317 = vsel %vm1253, %v1285, 0.0
        %v1318 = vsel %vm1254, %v1286, 0.0
        %v1319 = vsel %vm1255, %v1287, 0.0
        %v1320 = vsel %vm1256, %v1288, 0.0
        %v1321 = vsel %vm1257, %v1289, 0.0
        %v1322 = vsel %vm1258, %v1290, 0.0
        %v1323 = vsel %vm1259, %v1291, 0.0
        %v1324 = vsel %vm1260, %v1292, 0.0
        %v1325 = vsel %vm1261, %v1293, 0.0
        %v1326 = vsel %vm1262, %v1294, 0.0
        %v1327 = vsel %vm1263, %v1295, 0.0
        %v1328 = vsel %vm1264, %v1296, 0.0
        %v1329 = vsel %vm1265, %v1297, 0.0
        %v1330 = vsel %vm1266, %v1298, 0.0
        %v1331 = vsel %vm1267, %v1299, 0.0
        %v1332 = vsel %vm1268, %v1300, 0.0
        %v1333 = vsel %vm1269, %v1301, 0.0
        %v1334 = vsel %vm1270, %v1302, 0.0
        %v1335 = vsel %vm1271, %v1303, 0.0
        %v1336 = vsel %vm1240, 1, 0
        %v1337 = vsel %vm1241, 1, 0
        %v1338 = vsel %vm1242, 1, 0
        %v1339 = vsel %vm1243, 1, 0
        %v1340 = vsel %vm1244, 1, 0
        %v1341 = vsel %vm1245, 1, 0
        %v1342 = vsel %vm1246, 1, 0
        %v1343 = vsel %vm1247, 1, 0
        %v1344 = vsel %vm1248, 1, 0
        %v1345 = vsel %vm1249, 1, 0
        %v1346 = vsel %vm1250, 1, 0
        %v1347 = vsel %vm1251, 1, 0
        %v1348 = vsel %vm1252, 1, 0
        %v1349 = vsel %vm1253, 1, 0
        %v1350 = vsel %vm1254, 1, 0
        %v1351 = vsel %vm1255, 1, 0
        %v1352 = vsel %vm1256, 1, 0
        %v1353 = vsel %vm1257, 1, 0
        %v1354 = vsel %vm1258, 1, 0
        %v1355 = vsel %vm1259, 1, 0
        %v1356 = vsel %vm1260, 1, 0
        %v1357 = vsel %vm1261, 1, 0
        %v1358 = vsel %vm1262, 1, 0
        %v1359 = vsel %vm1263, 1, 0
        %v1360 = vsel %vm1264, 1, 0
        %v1361 = vsel %vm1265, 1, 0
        %v1362 = vsel %vm1266, 1, 0
        %v1363 = vsel %vm1267, 1, 0
        %v1364 = vsel %vm1268, 1, 0
        %v1365 = vsel %vm1269, 1, 0
        %v1366 = vsel %vm1270, 1, 0
        %v1367 = vsel %vm1271, 1, 0
        %v1368 = vcvt.s32.f32 %v1336
        %v1369 = vcvt.s32.f32 %v1337
        %v1370 = vcvt.s32.f32 %v1338
        %v1371 = vcvt.s32.f32 %v1339
        %v1372 = vcvt.s32.f32 %v1340
        %v1373 = vcvt.s32.f32 %v1341
        %v1374 = vcvt.s32.f32 %v1342
        %v1375 = vcvt.s32.f32 %v1343
        %v1376 = vcvt.s32.f32 %v1344
        %v1377 = vcvt.s32.f32 %v1345
        %v1378 = vcvt.s32.f32 %v1346
        %v1379 = vcvt.s32.f32 %v1347
        %v1380 = vcvt.s32.f32 %v1348
        %v1381 = vcvt.s32.f32 %v1349
        %v1382 = vcvt.s32.f32 %v1350
        %v1383 = vcvt.s32.f32 %v1351
        %v1384 = vcvt.s32.f32 %v1352
        %v1385 = vcvt.s32.f32 %v1353
        %v1386 = vcvt.s32.f32 %v1354
        %v1387 = vcvt.s32.f32 %v1355
        %v1388 = vcvt.s32.f32 %v1356
        %v1389 = vcvt.s32.f32 %v1357
        %v1390 = vcvt.s32.f32 %v1358
        %v1391 = vcvt.s32.f32 %v1359
        %v1392 = vcvt.s32.f32 %v1360
        %v1393 = vcvt.s32.f32 %v1361
        %v1394 = vcvt.s32.f32 %v1362
        %v1395 = vcvt.s32.f32 %v1363
        %v1396 = vcvt.s32.f32 %v1364
        %v1397 = vcvt.s32.f32 %v1365
        %v1398 = vcvt.s32.f32 %v1366
        %v1399 = vcvt.s32.f32 %v1367
        %1400 = vmatprep.subr.mxu0 %v1335
        %1401 = vmatpush1.xpose.msra.mxu0 %v1334
        %1402 = vmatprep.subr.mxu0 %v1333
        %1403 = vmatpush1.xpose.msra.mxu0 %v1332
        %1404 = vmatprep.subr.mxu0 %v1331
        %1405 = vmatpush1.xpose.msra.mxu0 %v1330
        %1406 = vmatprep.subr.mxu0 %v1329
        %1407 = vmatpush1.xpose.msra.mxu0 %v1328
        %1408 = vmatprep.subr.mxu0 %v1327
        %1409 = vmatpush1.xpose.msra.mxu0 %v1326
        %1410 = vmatprep.subr.mxu0 %v1325
        %1411 = vmatpush1.xpose.msra.mxu0 %v1324
        %1412 = vmatprep.subr.mxu0 %v1323
        %1413 = vmatpush1.xpose.msra.mxu0 %v1322
        %1414 = vmatprep.subr.mxu0 %v1321
        %1415 = vmatpush1.xpose.msra.mxu0 %v1320
        %1416 = vmatprep.subr.mxu0 %v1319
        %1417 = vmatpush1.xpose.msra.mxu0 %v1318
        %1418 = vmatprep.subr.mxu0 %v1317
        %1419 = vmatpush1.xpose.msra.mxu0 %v1316
        %1420 = vmatprep.subr.mxu0 %v1315
        %1421 = vmatpush1.xpose.msra.mxu0 %v1314
        %1422 = vmatprep.subr.mxu0 %v1313
        %1423 = vmatpush1.xpose.msra.mxu0 %v1312
        %1424 = vmatprep.subr.mxu0 %v1311
        %1425 = vmatpush1.xpose.msra.mxu0 %v1310
        %1426 = vmatprep.subr.mxu0 %v1309
        %1427 = vmatpush1.xpose.msra.mxu0 %v1308
        %1428 = vmatprep.subr.mxu0 %v1307
        %1429 = vmatpush1.xpose.msra.mxu0 %v1306
        %1430 = vmatprep.subr.mxu0 %v1305
        %1431 = vmatpush1.xpose.msra.mxu0 %v1304
        %1432 = vmatprep.subr.mxu0 0.0
        %1433 = vmatpush2.xpose.msra.mxu0 0.0
        %1434 = vmatprep.subr.mxu0 0.0
        %1435 = vmatpush2.xpose.msra.mxu0 0.0
        %1436 = vmatprep.subr.mxu0 0.0
        %1437 = vmatpush2.xpose.msra.mxu0 0.0
        %1438 = vmatprep.subr.mxu0 0.0
        %1439 = vmatpush2.xpose.msra.mxu0 0.0
        %1440 = vmatprep.subr.mxu0 0.0
        %1441 = vmatpush2.xpose.msra.mxu0 0.0
        %1442 = vmatprep.subr.mxu0 0.0
        %1443 = vmatpush2.xpose.msra.mxu0 0.0
        %1444 = vmatprep.subr.mxu0 0.0
        %1445 = vmatpush2.xpose.msra.mxu0 0.0
        %1446 = vmatprep.subr.mxu0 0.0
        %1447 = vmatpush2.xpose.msra.mxu0 0.0
        %1448 = vmatprep.subr.mxu0 0.0
        %1449 = vmatpush2.xpose.msra.mxu0 0.0
        %1450 = vmatprep.subr.mxu0 0.0
        %1451 = vmatpush2.xpose.msra.mxu0 0.0
        %1452 = vmatprep.subr.mxu0 0.0
        %1453 = vmatpush2.xpose.msra.mxu0 0.0
        %1454 = vmatprep.subr.mxu0 0.0
        %1455 = vmatpush2.xpose.msra.mxu0 0.0
        %1456 = vmatprep.subr.mxu0 0.0
        %1457 = vmatpush2.xpose.msra.mxu0 0.0
        %1458 = vmatprep.subr.mxu0 0.0
        %1459 = vmatpush2.xpose.msra.mxu0 0.0
        %1460 = vmatprep.subr.mxu0 0.0
        %1461 = vmatpush2.xpose.msra.mxu0 0.0
        %1462 = vmatprep.subr.mxu0 0.0
        %1463 = vmatpush2.xpose.msra.mxu0 0.0
        %1464 = vmatprep.mubr.f32.mxu0 1.0
        %1465 = vmatmul.mubr.f32.gmra.mxu0 1.0
        %v1466 = vpop.f32.mrf.mxu0
        %v1467 = vadd.f32 0.0, %v1466
        %v1468 = vpop.f32.mrf.mxu0
        %1469 = vdwg.mxu0
        %1470 = vmatprep.subr.mxu0 %v1399
        %1471 = vmatpush1.xpose.msra.mxu0 %v1398
        %1472 = vmatprep.subr.mxu0 %v1397
        %1473 = vmatpush1.xpose.msra.mxu0 %v1396
        %1474 = vmatprep.subr.mxu0 %v1395
        %1475 = vmatpush1.xpose.msra.mxu0 %v1394
        %1476 = vmatprep.subr.mxu0 %v1393
        %1477 = vmatpush1.xpose.msra.mxu0 %v1392
        %1478 = vmatprep.subr.mxu0 %v1391
        %1479 = vmatpush1.xpose.msra.mxu0 %v1390
        %1480 = vmatprep.subr.mxu0 %v1389
        %1481 = vmatpush1.xpose.msra.mxu0 %v1388
        %1482 = vmatprep.subr.mxu0 %v1387
        %1483 = vmatpush1.xpose.msra.mxu0 %v1386
        %1484 = vmatprep.subr.mxu0 %v1385
        %1485 = vmatpush1.xpose.msra.mxu0 %v1384
        %1486 = vmatprep.subr.mxu0 %v1383
        %1487 = vmatpush1.xpose.msra.mxu0 %v1382
        %1488 = vmatprep.subr.mxu0 %v1381
        %1489 = vmatpush1.xpose.msra.mxu0 %v1380
        %1490 = vmatprep.subr.mxu0 %v1379
        %1491 = vmatpush1.xpose.msra.mxu0 %v1378
        %1492 = vmatprep.subr.mxu0 %v1377
        %1493 = vmatpush1.xpose.msra.mxu0 %v1376
        %1494 = vmatprep.subr.mxu0 %v1375
        %1495 = vmatpush1.xpose.msra.mxu0 %v1374
        %1496 = vmatprep.subr.mxu0 %v1373
        %1497 = vmatpush1.xpose.msra.mxu0 %v1372
        %1498 = vmatprep.subr.mxu0 %v1371
        %1499 = vmatpush1.xpose.msra.mxu0 %v1370
        %1500 = vmatprep.subr.mxu0 %v1369
        %1501 = vmatpush1.xpose.msra.mxu0 %v1368
        %1502 = vmatprep.subr.mxu0 0.0
        %1503 = vmatpush2.xpose.msra.mxu0 0.0
        %1504 = vmatprep.subr.mxu0 0.0
        %1505 = vmatpush2.xpose.msra.mxu0 0.0
        %1506 = vmatprep.subr.mxu0 0.0
        %1507 = vmatpush2.xpose.msra.mxu0 0.0
        %1508 = vmatprep.subr.mxu0 0.0
        %1509 = vmatpush2.xpose.msra.mxu0 0.0
        %1510 = vmatprep.subr.mxu0 0.0
        %1511 = vmatpush2.xpose.msra.mxu0 0.0
        %1512 = vmatprep.subr.mxu0 0.0
        %1513 = vmatpush2.xpose.msra.mxu0 0.0
        %1514 = vmatprep.subr.mxu0 0.0
        %1515 = vmatpush2.xpose.msra.mxu0 0.0
        %1516 = vmatprep.subr.mxu0 0.0
        %1517 = vmatpush2.xpose.msra.mxu0 0.0
        %1518 = vmatprep.subr.mxu0 0.0
        %1519 = vmatpush2.xpose.msra.mxu0 0.0
        %1520 = vmatprep.subr.mxu0 0.0
        %1521 = vmatpush2.xpose.msra.mxu0 0.0
        %1522 = vmatprep.subr.mxu0 0.0
        %1523 = vmatpush2.xpose.msra.mxu0 0.0
        %1524 = vmatprep.subr.mxu0 0.0
        %1525 = vmatpush2.xpose.msra.mxu0 0.0
        %1526 = vmatprep.subr.mxu0 0.0
        %1527 = vmatpush2.xpose.msra.mxu0 0.0
        %1528 = vmatprep.subr.mxu0 0.0
        %1529 = vmatpush2.xpose.msra.mxu0 0.0
        %1530 = vmatprep.subr.mxu0 0.0
        %1531 = vmatpush2.xpose.msra.mxu0 0.0
        %1532 = vmatprep.subr.mxu0 0.0
        %1533 = vmatpush2.xpose.msra.mxu0 0.0
        %1534 = vmatprep.mubr.f32.mxu0 1.0
        %1535 = vmatmul.mubr.f32.gmra.mxu0 1.0
        %v1536 = vpop.f32.mrf.mxu0
        %v1537 = vadd.f32 0.0, %v1536
        %v1538 = vpop.f32.mrf.mxu0
        %1539 = vdwg.mxu0
        %v1541 = vrot.slane %v1537, 7
        %vm1543 = vcmask 1040384
        %v1544 = vsel %vm1543, %v1467, %v1541
        %1545 = vst [vmem:[%s222] sm:$0x3] %v1544
        %s1546 = sand.u32 %s121, 1
        %s1547 = scalar_lea.sflag [#allocation4], %s1546
        %s1548 = sand.u32 %s121, 1
        %s1549 = smul.addr %s1548, 2
        %s1550 = scalar_lea.vmem [#allocation5], %s1549
        // Predicated region
        $region41: #{tpu_custom_call.1} parent=35 // pred_check
          %p1551 = pneg %p131
        $region42: #{tpu_custom_call.1} parent=35 // pred_check_branch
          %1553 = sbr.rel (%p1551) target = $region44
        $region43: #{tpu_custom_call.1} parent=35 // pred_region
          %s1555 = ssub.s32 32, 32
          %1556 = vsyncadd %s1547, %s1555
          %s1557 = smul.addr %s19, 32
          %s1558 = scalar_lea.hbm %s4, %s1557
          %s1560 = sshll.u32 %s1550, 4
          %s1561 = int_to_ptr.vmem [resolvable:$true] %s1560
          %1563 = dma.vmem_to_hbm [thread:$0]  %s1561, 32, %s1558, %s1547
        $region44: #{tpu_custom_call.1} parent=35 // pred_fallthru
          _
      $region36: #{tpu_custom_call.1} parent=5 // pred_fallthru
        _
      %p1564 = scmp.le.s32.totalorder 2, %s14
      // Predicated region
      $region45: #{tpu_custom_call.1} parent=5 // pred_check
        %p1565 = pneg %p1564
      $region46: #{tpu_custom_call.1} parent=5 // pred_check_branch
        %1567 = sbr.rel (%p1565) target = $region48
      $region47: #{tpu_custom_call.1} parent=5 // pred_region
        %s1568 = ssub.s32 %s14, 2
        // Predicated region
        $region49: #{tpu_custom_call.1} parent=47 // pred_check
          %p1569 = pneg %p137
        $region50: #{tpu_custom_call.1} parent=47 // pred_check_branch
          %1571 = sbr.rel (%p1569) target = $region52
        $region51: #{tpu_custom_call.1} parent=47 // pred_region
          %s1572 = sand.u32 %s122, 1
          %s1573 = scalar_lea.sflag [#allocation4], %s1572
          %s1574 = sand.u32 %s122, 1
          %s1575 = smul.addr %s1574, 2
          %s1576 = scalar_lea.vmem [#allocation5], %s1575
          %1577 = dma.done %s1573, 32
        $region52: #{tpu_custom_call.1} parent=47 // pred_fallthru
          _
      $region48: #{tpu_custom_call.1} parent=5 // pred_fallthru
        _
    $region6: #{tpu_custom_call.1} parent=1 // loop_footer
      %s18 = sadd.s32 1, %s14
    $region7: #{tpu_custom_call.1} parent=1 // loop_footer_branch
      %13 = sbr.rel target = $region3
    $region8: #{tpu_custom_call.1} parent=1 // loop_exit
      _
    %1578 = vsyncpa [#allocation3], 1
    %s1579 = scalar_lea.sflag [#allocation3], 1
    %1580 = vsyncpa %s1579, 1
    %1581 = vsyncpa [#allocation4], 1
    %s1582 = scalar_lea.sflag [#allocation4], 1
    %1583 = vsyncpa %s1582, 1

</llo_original>
